<compile_context>
chip_gen: v5e
topology: v5e:2x2
jax: 0.10.0
libtpu: 0.0.40
codegen_flags: <defaults>
</compile_context>

<pallas_src>
import math
from functools import partial

import jax
import jax.numpy as jnp
from jax import lax
from jax.experimental import pallas as pl
from jax.experimental.pallas import tpu as pltpu


def _sigmoid(x):
    # explicit formulation -> exp lowers to the EUP slot
    return 1.0 / (1.0 + jnp.exp(-x))


# ----------------------------------------------------------------------------
# tile-size helpers
# ----------------------------------------------------------------------------
def _row_tile(M, F, budget_bytes=8 * 1024 * 1024):
    """Row tile for the precompute kernel: as big as the VMEM budget allows,
    capped at 512, multiple of 8 (or the full extent when M is small)."""
    per_row = (F + 2 + 5 * F) * 4 * 2          # double-buffered in + out rows
    tm = max(8, min(512, budget_bytes // max(per_row, 1)))
    tm = (tm // 8) * 8
    if tm >= M:
        return M
    return max(tm, 8)


def _batch_tile(B, target=128):
    if B <= target:
        return B
    return max((target // 8) * 8, 8)


def _divisor_tile(n, target):
    """Largest divisor of n that is <= target (keeps time chunks exact)."""
    best = 1
    for c in range(1, min(n, target) + 1):
        if n % c == 0:
            best = c
    return best


# ----------------------------------------------------------------------------
# Kernel 1: batched precompute of every h-independent gate quantity
# ----------------------------------------------------------------------------
def _gate_precompute_kernel(x_ref, delta_ref, wx_ref, const_ref, gates_ref, *, F):
    x = x_ref[...]                                  # (TM, F)
    dt = delta_ref[:, 0:1]                          # (TM, 1)
    dd = delta_ref[:, 1:2]                          # (TM, 1)

    bx = const_ref[0:1, :]                          # (1, 7F)
    vt = const_ref[1:2, 0:3 * F]                    # (1, 3F)  wfct @ Wt
    ct = const_ref[2:3, 0:3 * F]                    # (1, 3F)  bfct @ Wt + bt
    vd = const_ref[3:4, 0:3 * F]
    cd = const_ref[4:5, 0:3 * F]

    # single fat MXU matmul for the whole x-path
    gx = jnp.dot(x, wx_ref[...], preferred_element_type=jnp.float32) + bx   # (TM, 7F)
    # rank-1 folded t-/d-paths: broadcast FMAs on the VPU (no MXU, no extra DMA)
    gt = dt * vt + ct                               # (TM, 3F)
    gd = dd * vd + cd                               # (TM, 3F)

    ipre = gx[:, 0:F]
    cpre = gx[:, F:2 * F]
    opre = gx[:, 2 * F:3 * F] + gt[:, 2 * F:3 * F] + gd[:, 2 * F:3 * F]

    t1 = _sigmoid(gx[:, 3 * F:4 * F] + _sigmoid(gt[:, 0:F]))
    t2 = _sigmoid(gx[:, 4 * F:5 * F] + _sigmoid(gt[:, F:2 * F]))
    d1 = _sigmoid(gx[:, 5 * F:6 * F] + _sigmoid(gd[:, 0:F]))
    d2 = _sigmoid(gx[:, 6 * F:7 * F] + _sigmoid(gd[:, F:2 * F]))

    # one fused lane-dense store: [ipre | cpre | opre | t1*d1 | t2*d2]
    gates_ref[...] = jnp.concatenate([ipre, cpre, opre, t1 * d1, t2 * d2], axis=-1)


def gate_precompute(x, deltas, wx, consts):
    """x: (M, F) time-major rows, deltas: (M, 2) = [dt|dd].
    Returns the fused gate tensor (M, 5F)."""
    M, F = x.shape
    TM = _row_tile(M, F)
    grid = (pl.cdiv(M, TM),)
    return pl.pallas_call(
        partial(_gate_precompute_kernel, F=F),
        grid=grid,
        in_specs=[pl.BlockSpec((TM, F), lambda m: (m, 0)),
                  pl.BlockSpec((TM, 2), lambda m: (m, 0)),
                  pl.BlockSpec(wx.shape, lambda m: (0, 0)),
                  pl.BlockSpec(consts.shape, lambda m: (0, 0))],
        out_specs=pl.BlockSpec((TM, 5 * F), lambda m: (m, 0)),
        out_shape=jax.ShapeDtypeStruct((M, 5 * F), jnp.float32),
        compiler_params=pltpu.CompilerParams(
            dimension_semantics=("parallel",),
            vmem_limit_bytes=32 * 1024 * 1024),
    )(x, deltas, wx, consts)


# ----------------------------------------------------------------------------
# Kernel 2: sequential STGN recurrence (streamed over time, tiled over batch)
# ----------------------------------------------------------------------------
def _stgn_recurrence_kernel(gates_ref, wh_ref, h_out_ref, h_ref, c_ref, *, TL, F):
    t = pl.program_id(1)

    @pl.when(t == 0)
    def _():                                        # h0[0], c0[0]
        h_ref[...] = jnp.zeros_like(h_ref)
        c_ref[...] = jnp.zeros_like(c_ref)

    def step(l, carry):
        g = gates_ref[l]                            # (TB, 5F)
        h = h_ref[...]
        c = c_ref[...]
        hg = jnp.dot(h, wh_ref[...], preferred_element_type=jnp.float32)   # (TB, 3F)
        i    = _sigmoid(g[:, 0:F] + hg[:, 0:F])
        cand = jnp.tanh(g[:, F:2 * F] + hg[:, F:2 * F])
        o    = _sigmoid(g[:, 2 * F:3 * F] + hg[:, 2 * F:3 * F])
        itd1 = i * g[:, 3 * F:4 * F]
        hat_c = (1.0 - itd1) * c + itd1 * cand
        # reference: out_c = (i - i)*c + i*t2*d2*candi_c  -> (i-i)*c is exactly 0
        h_ref[...] = o * jnp.tanh(hat_c)
        c_ref[...] = i * g[:, 4 * F:5 * F] * cand
        return carry

    lax.fori_loop(0, TL, step, 0, unroll=min(TL, 8))

    @pl.when(t == pl.num_programs(1) - 1)
    def _():
        h_out_ref[...] = h_ref[...]


def stgn_recurrence(gates, wh):
    """gates: (L, B, 5F) time-major fused gate tensor; wh: (F, 3F) -> h_final (B, F)."""
    L, B, G = gates.shape
    F = wh.shape[0]
    TB = _batch_tile(B)
    TL = _divisor_tile(L, 64)                       # exact time chunks, VMEM-bounded
    grid = (pl.cdiv(B, TB), L // TL)
    return pl.pallas_call(
        partial(_stgn_recurrence_kernel, TL=TL, F=F),
        grid=grid,
        in_specs=[pl.BlockSpec((TL, TB, G), lambda b, t: (t, b, 0)),
                  pl.BlockSpec(wh.shape, lambda b, t: (0, 0))],
        out_specs=pl.BlockSpec((TB, F), lambda b, t: (b, 0)),
        out_shape=jax.ShapeDtypeStruct((B, F), jnp.float32),
        scratch_shapes=[pltpu.VMEM((TB, F), jnp.float32),   # h
                        pltpu.VMEM((TB, F), jnp.float32)],  # c
        compiler_params=pltpu.CompilerParams(
            dimension_semantics=("parallel", "arbitrary"),
            vmem_limit_bytes=32 * 1024 * 1024),
    )(gates, wh)


# ----------------------------------------------------------------------------
# Kernel 3: output projection Linear(F, poiNum), tiled over poiNum
# ----------------------------------------------------------------------------
def _output_proj_kernel(h_ref, w_ref, b_ref, o_ref):
    o_ref[...] = (jnp.dot(h_ref[...], w_ref[...],
                          preferred_element_type=jnp.float32) + b_ref[...])


def output_projection(h, wout, bout):
    """h: (B, F); wout: (F, P); bout: (1, P) -> (B, P)."""
    B, F = h.shape
    P = wout.shape[1]
    TP = P if P <= 512 else 512                     # 512 is a multiple of 128
    grid = (pl.cdiv(P, TP),)
    return pl.pallas_call(
        _output_proj_kernel,
        grid=grid,
        in_specs=[pl.BlockSpec((B, F), lambda j: (0, 0)),
                  pl.BlockSpec((F, TP), lambda j: (0, j)),
                  pl.BlockSpec((1, TP), lambda j: (0, j))],
        out_specs=pl.BlockSpec((B, TP), lambda j: (0, j)),
        out_shape=jax.ShapeDtypeStruct((B, P), jnp.float32),
        compiler_params=pltpu.CompilerParams(
            dimension_semantics=("parallel",),
            vmem_limit_bytes=32 * 1024 * 1024),
    )(h, wout, bout)


# ----------------------------------------------------------------------------
# Model glue
# ----------------------------------------------------------------------------
def _distance(lat1, lon1, lat2, lon2):
    p = math.pi / 180.0
    a = (0.5 - jnp.cos((lat2 - lat1) * p) / 2.0
         + jnp.cos(lat1 * p) * jnp.cos(lat2 * p) * (1.0 - jnp.cos((lon2 - lon1) * p)) / 2.0)
    return 12742.0 * jnp.arcsin(jnp.sqrt(a))


def init_params(key, features, userNum, poiNum, catNum):
    F = features
    keys = iter(jax.random.split(key, 64))
    nk = lambda: next(keys)

    def lin(din, dout):
        lim = 1.0 / math.sqrt(din)
        k1, k2 = jax.random.split(nk())
        return {'w': jax.random.uniform(k1, (din, dout), jnp.float32, -lim, lim),
                'b': jax.random.uniform(k2, (dout,), jnp.float32, -lim, lim)}

    def emb(n, d):
        return jax.random.normal(nk(), (n, d), dtype=jnp.float32)

    return {
        # embeddings (forward only reads poi_emb, like the reference)
        'user_emb': emb(userNum, F), 'poi_emb': emb(poiNum, F), 'cat_emb': emb(catNum, F),
        'tod_emb': emb(24, F), 'dow_emb': emb(7, F),
        # STGN_Module linears  (weights stored as (in, out) == W.T)
        'ilinear': lin(2 * F, F), 'clinear': lin(2 * F, F),
        't1linear1': lin(F, F), 't1linear2': lin(F, F),
        't2linear1': lin(F, F), 't2linear2': lin(F, F),
        'd1linear1': lin(F, F), 'd1linear2': lin(F, F),
        'd2linear1': lin(F, F), 'd2linear2': lin(F, F),
        'olinear1': lin(2 * F, F), 'olinear2': lin(F, F), 'olinear3': lin(F, F),
        'fcd': lin(1, F), 'fct': lin(1, F),
        'linear': lin(F, poiNum),
    }


def stgn_forward(params, features, user, poi, cat, lat, lon, tod, dow, unixtime):
    # user / cat / tod / dow are accepted but unused by the dense path, exactly
    # like the reference forward (it only uses poi + lat/lon/unixtime + shapes).
    del user, cat, tod, dow
    p = params
    F = features
    B, L = poi.shape

    inputs = jnp.take(p['poi_emb'], poi, axis=0)                       # (B, L, F)

    # ---- delta_t / delta_d, exactly as in the reference (note: the reference
    #      passes lat[:, l] as lon2 to distance(); replicated on purpose). ----
    dt = jnp.abs(unixtime[:, 1:] - unixtime[:, :-1]).astype(jnp.float32)
    dt = jnp.concatenate([jnp.zeros((B, 1), jnp.float32), dt], axis=1)           # (B, L)
    dd = _distance(lat[:, :-1], lon[:, :-1], lat[:, 1:], lat[:, 1:]).astype(jnp.float32)
    dd = jnp.concatenate([jnp.zeros((B, 1), jnp.float32), dd], axis=1)           # (B, L)
    # NOTE: matches reference; if all deltas are equal this is 0/0 -> NaN (reference bug)
    dt = (dt - jnp.min(dt)) / (jnp.max(dt) - jnp.min(dt))
    dd = (dd - jnp.min(dd)) / (jnp.max(dd) - jnp.min(dd))

    # ---- pack fused weights.  t1linear2 / d1linear2 weights are clamped
    #      (max=0) at pack time, equivalent to the reference in-place clamp
    #      for a forward pass. ------------------------------------------------
    wxi, whi = p['ilinear']['w'][:F], p['ilinear']['w'][F:]
    wxc, whc = p['clinear']['w'][:F], p['clinear']['w'][F:]
    wxo, who = p['olinear1']['w'][:F], p['olinear1']['w'][F:]
    wx = jnp.concatenate([wxi, wxc, wxo,
                          p['t1linear1']['w'], p['t2linear1']['w'],
                          p['d1linear1']['w'], p['d2linear1']['w']], axis=1)      # (F, 7F)
    bx = jnp.concatenate([p['ilinear']['b'], p['clinear']['b'], p['olinear1']['b'],
                          p['t1linear1']['b'], p['t2linear1']['b'],
                          p['d1linear1']['b'], p['d2linear1']['b']])              # (7F,)
    wh = jnp.concatenate([whi, whc, who], axis=1)                                  # (F, 3F)
    wt = jnp.concatenate([jnp.minimum(p['t1linear2']['w'], 0.0),
                          p['t2linear2']['w'], p['olinear2']['w']], axis=1)        # (F, 3F)
    bt = jnp.concatenate([p['t1linear2']['b'], p['t2linear2']['b'],
                          p['olinear2']['b']])[None, :]                            # (1, 3F)
    wd = jnp.concatenate([jnp.minimum(p['d1linear2']['w'], 0.0),
                          p['d2linear2']['w'], p['olinear3']['w']], axis=1)        # (F, 3F)
    bd = jnp.concatenate([p['d1linear2']['b'], p['d2linear2']['b'],
                          p['olinear3']['b']])[None, :]                            # (1, 3F)

    # ---- rank-1 fold of the t-/d-paths (fct/fcd are Linear(1, F)):
    #      fct(dt) @ Wt == dt * (wfct @ Wt) + (bfct @ Wt + bt) ----------------
    vt = p['fct']['w'] @ wt                                                        # (1, 3F)
    ct = p['fct']['b'][None, :] @ wt + bt                                          # (1, 3F)
    vd = p['fcd']['w'] @ wd
    cd = p['fcd']['b'][None, :] @ wd + bd

    # pack all small constants into one (8, 7F) array -> one kernel input
    consts = jnp.zeros((8, 7 * F), jnp.float32)
    consts = consts.at[0, :].set(bx)
    consts = consts.at[1, :3 * F].set(vt[0])
    consts = consts.at[2, :3 * F].set(ct[0])
    consts = consts.at[3, :3 * F].set(vd[0])
    consts = consts.at[4, :3 * F].set(cd[0])

    # time-major flatten so the recurrence kernel indexes timesteps on dim 0
    x_lb = jnp.transpose(inputs, (1, 0, 2)).reshape(L * B, F)
    deltas = jnp.stack([jnp.transpose(dt).reshape(L * B),
                        jnp.transpose(dd).reshape(L * B)], axis=1)                 # (L*B, 2)

    gates = gate_precompute(x_lb, deltas, wx, consts).reshape(L, B, 5 * F)
    h_final = stgn_recurrence(gates, wh)
    pre = output_projection(h_final, p['linear']['w'], p['linear']['b'][None, :])
    return pre, pre


# ----------------------------------------------------------------------------
# Main
# ----------------------------------------------------------------------------
if __name__ == "__main__":
    features = 32
    userNum, poiNum, catNum = 10, 40, 12
    B, L = 2, 8

    params = init_params(jax.random.PRNGKey(0), features, userNum, poiNum, catNum)

    dk = jax.random.split(jax.random.PRNGKey(0), 8)
    user = jax.random.randint(dk[0], (B, L), 0, userNum)
    poi = jax.random.randint(dk[1], (B, L), 0, poiNum)
    cat = jax.random.randint(dk[2], (B, L), 0, catNum)
    tod = jax.random.randint(dk[3], (B, L), 0, 24)
    dow = jax.random.randint(dk[4], (B, L), 0, 7)
    lat = 30.0 + jax.random.uniform(dk[5], (B, L), jnp.float32)
    lon = 120.0 + jax.random.uniform(dk[6], (B, L), jnp.float32)
    unixtime = jnp.cumsum(
        jax.random.uniform(dk[7], (B, L), jnp.float32, 60.0, 3600.0), axis=1)

    fwd = jax.jit(stgn_forward, static_argnums=(1,))
    pre1, pre2 = jax.block_until_ready(
        fwd(params, features, user, poi, cat, lat, lon, tod, dow, unixtime))

    assert pre1.shape == (B, poiNum) and pre2.shape == (B, poiNum)
    assert bool(jnp.all(jnp.isfinite(pre1)))
    print("KERNEL_OK")
</pallas_src>

<mosaic_0001>
module attributes {stable_mosaic.version = 11 : i64} {
  func.func @_gate_precompute_kernel(%arg0: i32, %arg1: memref<16x32xf32, #tpu.memory_space<vmem>>, %arg2: memref<16x2xf32, #tpu.memory_space<vmem>>, %arg3: memref<32x224xf32, #tpu.memory_space<vmem>>, %arg4: memref<8x224xf32, #tpu.memory_space<vmem>>, %arg5: memref<16x160xf32, #tpu.memory_space<vmem>>) attributes {dimension_semantics = [#tpu.dimension_semantics<parallel>], iteration_bounds = array<i64: 1>, scalar_prefetch = 0 : i64, scratch_operands = 0 : i64, tpu.core_type = #tpu.core_type<tc>, window_params = [{transform_indices = @transform_0, window_bounds = array<i64: 16, 32>}, {transform_indices = @transform_1, window_bounds = array<i64: 16, 2>}, {pipeline_mode = #tpu.pipeline_mode<synchronous>, transform_indices = @transform_2, window_bounds = array<i64: 32, 224>}, {pipeline_mode = #tpu.pipeline_mode<synchronous>, transform_indices = @transform_3, window_bounds = array<i64: 8, 224>}, {transform_indices = @transform_4, window_bounds = array<i64: 16, 160>}]} {
    %c0 = arith.constant 0 : index
    %c0_0 = arith.constant 0 : index
    %0 = vector.load %arg1[%c0, %c0_0] : memref<16x32xf32, #tpu.memory_space<vmem>>, vector<16x32xf32>
    %c0_1 = arith.constant 0 : index
    %c0_2 = arith.constant 0 : index
    %1 = vector.load %arg2[%c0_1, %c0_2] : memref<16x2xf32, #tpu.memory_space<vmem>>, vector<16x1xf32>
    %c0_3 = arith.constant 0 : index
    %c1 = arith.constant 1 : index
    %2 = vector.load %arg2[%c0_3, %c1] : memref<16x2xf32, #tpu.memory_space<vmem>>, vector<16x1xf32>
    %c0_4 = arith.constant 0 : index
    %c0_5 = arith.constant 0 : index
    %3 = vector.load %arg4[%c0_4, %c0_5] : memref<8x224xf32, #tpu.memory_space<vmem>>, vector<1x224xf32>
    %c1_6 = arith.constant 1 : index
    %c0_7 = arith.constant 0 : index
    %4 = vector.load %arg4[%c1_6, %c0_7] : memref<8x224xf32, #tpu.memory_space<vmem>>, vector<1x96xf32>
    %c2 = arith.constant 2 : index
    %c0_8 = arith.constant 0 : index
    %5 = vector.load %arg4[%c2, %c0_8] : memref<8x224xf32, #tpu.memory_space<vmem>>, vector<1x96xf32>
    %c3 = arith.constant 3 : index
    %c0_9 = arith.constant 0 : index
    %6 = vector.load %arg4[%c3, %c0_9] : memref<8x224xf32, #tpu.memory_space<vmem>>, vector<1x96xf32>
    %c4 = arith.constant 4 : index
    %c0_10 = arith.constant 0 : index
    %7 = vector.load %arg4[%c4, %c0_10] : memref<8x224xf32, #tpu.memory_space<vmem>>, vector<1x96xf32>
    %c0_11 = arith.constant 0 : index
    %c0_12 = arith.constant 0 : index
    %8 = vector.load %arg3[%c0_11, %c0_12] : memref<32x224xf32, #tpu.memory_space<vmem>>, vector<32x224xf32>
    %cst = arith.constant dense<0.000000e+00> : vector<16x224xf32>
    %9 = tpu.matmul %0, %8, %cst {dimension_numbers = #tpu.dot_dimension_numbers<[1], [0], [0], [1], [0, 0, 1, 1], [], []>} : vector<16x32xf32>, vector<32x224xf32>, vector<16x224xf32> -> vector<16x224xf32>
    %10 = vector.broadcast %3 : vector<1x224xf32> to vector<16x224xf32>
    %11 = arith.addf %9, %10 : vector<16x224xf32>
    %12 = vector.broadcast %1 : vector<16x1xf32> to vector<16x96xf32>
    %13 = vector.broadcast %4 : vector<1x96xf32> to vector<16x96xf32>
    %14 = arith.mulf %12, %13 : vector<16x96xf32>
    %15 = vector.broadcast %5 : vector<1x96xf32> to vector<16x96xf32>
    %16 = arith.addf %14, %15 : vector<16x96xf32>
    %17 = vector.broadcast %2 : vector<16x1xf32> to vector<16x96xf32>
    %18 = vector.broadcast %6 : vector<1x96xf32> to vector<16x96xf32>
    %19 = arith.mulf %17, %18 : vector<16x96xf32>
    %20 = vector.broadcast %7 : vector<1x96xf32> to vector<16x96xf32>
    %21 = arith.addf %19, %20 : vector<16x96xf32>
    %22 = vector.extract_strided_slice %11 {offsets = [0, 0], sizes = [16, 32], strides = [1, 1]} : vector<16x224xf32> to vector<16x32xf32>
    %23 = vector.extract_strided_slice %11 {offsets = [0, 32], sizes = [16, 32], strides = [1, 1]} : vector<16x224xf32> to vector<16x32xf32>
    %24 = vector.extract_strided_slice %11 {offsets = [0, 64], sizes = [16, 32], strides = [1, 1]} : vector<16x224xf32> to vector<16x32xf32>
    %25 = vector.extract_strided_slice %16 {offsets = [0, 64], sizes = [16, 32], strides = [1, 1]} : vector<16x96xf32> to vector<16x32xf32>
    %26 = arith.addf %24, %25 : vector<16x32xf32>
    %27 = vector.extract_strided_slice %21 {offsets = [0, 64], sizes = [16, 32], strides = [1, 1]} : vector<16x96xf32> to vector<16x32xf32>
    %28 = arith.addf %26, %27 : vector<16x32xf32>
    %29 = vector.extract_strided_slice %11 {offsets = [0, 96], sizes = [16, 32], strides = [1, 1]} : vector<16x224xf32> to vector<16x32xf32>
    %30 = vector.extract_strided_slice %16 {offsets = [0, 0], sizes = [16, 32], strides = [1, 1]} : vector<16x96xf32> to vector<16x32xf32>
    %cst_13 = arith.constant 0.000000e+00 : f32
    %31 = vector.broadcast %cst_13 : f32 to vector<16x32xf32>
    %32 = arith.subf %31, %30 : vector<16x32xf32>
    %33 = math.exp %32 : vector<16x32xf32>
    %cst_14 = arith.constant 1.000000e+00 : f32
    %34 = vector.broadcast %cst_14 : f32 to vector<16x32xf32>
    %35 = arith.addf %34, %33 : vector<16x32xf32>
    %cst_15 = arith.constant 1.000000e+00 : f32
    %36 = vector.broadcast %cst_15 : f32 to vector<16x32xf32>
    %37 = arith.divf %36, %35 : vector<16x32xf32>
    %38 = arith.addf %29, %37 : vector<16x32xf32>
    %cst_16 = arith.constant 0.000000e+00 : f32
    %39 = vector.broadcast %cst_16 : f32 to vector<16x32xf32>
    %40 = arith.subf %39, %38 : vector<16x32xf32>
    %41 = math.exp %40 : vector<16x32xf32>
    %cst_17 = arith.constant 1.000000e+00 : f32
    %42 = vector.broadcast %cst_17 : f32 to vector<16x32xf32>
    %43 = arith.addf %42, %41 : vector<16x32xf32>
    %cst_18 = arith.constant 1.000000e+00 : f32
    %44 = vector.broadcast %cst_18 : f32 to vector<16x32xf32>
    %45 = arith.divf %44, %43 : vector<16x32xf32>
    %46 = vector.extract_strided_slice %11 {offsets = [0, 128], sizes = [16, 32], strides = [1, 1]} : vector<16x224xf32> to vector<16x32xf32>
    %47 = vector.extract_strided_slice %16 {offsets = [0, 32], sizes = [16, 32], strides = [1, 1]} : vector<16x96xf32> to vector<16x32xf32>
    %cst_19 = arith.constant 0.000000e+00 : f32
    %48 = vector.broadcast %cst_19 : f32 to vector<16x32xf32>
    %49 = arith.subf %48, %47 : vector<16x32xf32>
    %50 = math.exp %49 : vector<16x32xf32>
    %cst_20 = arith.constant 1.000000e+00 : f32
    %51 = vector.broadcast %cst_20 : f32 to vector<16x32xf32>
    %52 = arith.addf %51, %50 : vector<16x32xf32>
    %cst_21 = arith.constant 1.000000e+00 : f32
    %53 = vector.broadcast %cst_21 : f32 to vector<16x32xf32>
    %54 = arith.divf %53, %52 : vector<16x32xf32>
    %55 = arith.addf %46, %54 : vector<16x32xf32>
    %cst_22 = arith.constant 0.000000e+00 : f32
    %56 = vector.broadcast %cst_22 : f32 to vector<16x32xf32>
    %57 = arith.subf %56, %55 : vector<16x32xf32>
    %58 = math.exp %57 : vector<16x32xf32>
    %cst_23 = arith.constant 1.000000e+00 : f32
    %59 = vector.broadcast %cst_23 : f32 to vector<16x32xf32>
    %60 = arith.addf %59, %58 : vector<16x32xf32>
    %cst_24 = arith.constant 1.000000e+00 : f32
    %61 = vector.broadcast %cst_24 : f32 to vector<16x32xf32>
    %62 = arith.divf %61, %60 : vector<16x32xf32>
    %63 = vector.extract_strided_slice %11 {offsets = [0, 160], sizes = [16, 32], strides = [1, 1]} : vector<16x224xf32> to vector<16x32xf32>
    %64 = vector.extract_strided_slice %21 {offsets = [0, 0], sizes = [16, 32], strides = [1, 1]} : vector<16x96xf32> to vector<16x32xf32>
    %cst_25 = arith.constant 0.000000e+00 : f32
    %65 = vector.broadcast %cst_25 : f32 to vector<16x32xf32>
    %66 = arith.subf %65, %64 : vector<16x32xf32>
    %67 = math.exp %66 : vector<16x32xf32>
    %cst_26 = arith.constant 1.000000e+00 : f32
    %68 = vector.broadcast %cst_26 : f32 to vector<16x32xf32>
    %69 = arith.addf %68, %67 : vector<16x32xf32>
    %cst_27 = arith.constant 1.000000e+00 : f32
    %70 = vector.broadcast %cst_27 : f32 to vector<16x32xf32>
    %71 = arith.divf %70, %69 : vector<16x32xf32>
    %72 = arith.addf %63, %71 : vector<16x32xf32>
    %cst_28 = arith.constant 0.000000e+00 : f32
    %73 = vector.broadcast %cst_28 : f32 to vector<16x32xf32>
    %74 = arith.subf %73, %72 : vector<16x32xf32>
    %75 = math.exp %74 : vector<16x32xf32>
    %cst_29 = arith.constant 1.000000e+00 : f32
    %76 = vector.broadcast %cst_29 : f32 to vector<16x32xf32>
    %77 = arith.addf %76, %75 : vector<16x32xf32>
    %cst_30 = arith.constant 1.000000e+00 : f32
    %78 = vector.broadcast %cst_30 : f32 to vector<16x32xf32>
    %79 = arith.divf %78, %77 : vector<16x32xf32>
    %80 = vector.extract_strided_slice %11 {offsets = [0, 192], sizes = [16, 32], strides = [1, 1]} : vector<16x224xf32> to vector<16x32xf32>
    %81 = vector.extract_strided_slice %21 {offsets = [0, 32], sizes = [16, 32], strides = [1, 1]} : vector<16x96xf32> to vector<16x32xf32>
    %cst_31 = arith.constant 0.000000e+00 : f32
    %82 = vector.broadcast %cst_31 : f32 to vector<16x32xf32>
    %83 = arith.subf %82, %81 : vector<16x32xf32>
    %84 = math.exp %83 : vector<16x32xf32>
    %cst_32 = arith.constant 1.000000e+00 : f32
    %85 = vector.broadcast %cst_32 : f32 to vector<16x32xf32>
    %86 = arith.addf %85, %84 : vector<16x32xf32>
    %cst_33 = arith.constant 1.000000e+00 : f32
    %87 = vector.broadcast %cst_33 : f32 to vector<16x32xf32>
    %88 = arith.divf %87, %86 : vector<16x32xf32>
    %89 = arith.addf %80, %88 : vector<16x32xf32>
    %cst_34 = arith.constant 0.000000e+00 : f32
    %90 = vector.broadcast %cst_34 : f32 to vector<16x32xf32>
    %91 = arith.subf %90, %89 : vector<16x32xf32>
    %92 = math.exp %91 : vector<16x32xf32>
    %cst_35 = arith.constant 1.000000e+00 : f32
    %93 = vector.broadcast %cst_35 : f32 to vector<16x32xf32>
    %94 = arith.addf %93, %92 : vector<16x32xf32>
    %cst_36 = arith.constant 1.000000e+00 : f32
    %95 = vector.broadcast %cst_36 : f32 to vector<16x32xf32>
    %96 = arith.divf %95, %94 : vector<16x32xf32>
    %97 = arith.mulf %45, %79 : vector<16x32xf32>
    %98 = arith.mulf %62, %96 : vector<16x32xf32>
    %99 = tpu.concatenate %22, %23, %28, %97, %98 in 1 : vector<16x32xf32>, vector<16x32xf32>, vector<16x32xf32>, vector<16x32xf32>, vector<16x32xf32> -> vector<16x160xf32>
    %c0_37 = arith.constant 0 : index
    %c0_38 = arith.constant 0 : index
    %100 = vector.load %arg5[%c0_37, %c0_38] : memref<16x160xf32, #tpu.memory_space<vmem>>, vector<16x160xf32>
    tpu.vector_store %arg5[%c0_37, %c0_38], %99 {strides = array<i32>} : memref<16x160xf32, #tpu.memory_space<vmem>>, vector<16x160xf32>,
    return
  }
  func.func @transform_0(%arg0: i32) -> (i32, i32) {
    %c0_i32 = arith.constant 0 : i32
    %c0_i32_0 = arith.constant 0 : i32
    return %arg0, %c0_i32 : i32, i32
  }
  func.func @transform_1(%arg0: i32) -> (i32, i32) {
    %c0_i32 = arith.constant 0 : i32
    %c0_i32_0 = arith.constant 0 : i32
    return %arg0, %c0_i32 : i32, i32
  }
  func.func @transform_2(%arg0: i32) -> (i32, i32) {
    %c0_i32 = arith.constant 0 : i32
    %c0_i32_0 = arith.constant 0 : i32
    %c0_i32_1 = arith.constant 0 : i32
    return %c0_i32, %c0_i32_0 : i32, i32
  }
  func.func @transform_3(%arg0: i32) -> (i32, i32) {
    %c0_i32 = arith.constant 0 : i32
    %c0_i32_0 = arith.constant 0 : i32
    %c0_i32_1 = arith.constant 0 : i32
    return %c0_i32, %c0_i32_0 : i32, i32
  }
  func.func @transform_4(%arg0: i32) -> (i32, i32) {
    %c0_i32 = arith.constant 0 : i32
    %c0_i32_0 = arith.constant 0 : i32
    return %arg0, %c0_i32 : i32, i32
  }
}

module attributes {stable_mosaic.version = 11 : i64} {
  func.func @_output_proj_kernel(%arg0: i32, %arg1: memref<2x32xf32, #tpu.memory_space<vmem>>, %arg2: memref<32x40xf32, #tpu.memory_space<vmem>>, %arg3: memref<1x40xf32, #tpu.memory_space<vmem>>, %arg4: memref<2x40xf32, #tpu.memory_space<vmem>>) attributes {dimension_semantics = [#tpu.dimension_semantics<parallel>], iteration_bounds = array<i64: 1>, scalar_prefetch = 0 : i64, scratch_operands = 0 : i64, tpu.core_type = #tpu.core_type<tc>, window_params = [{pipeline_mode = #tpu.pipeline_mode<synchronous>, transform_indices = @transform_0, window_bounds = array<i64: 2, 32>}, {transform_indices = @transform_1, window_bounds = array<i64: 32, 40>}, {transform_indices = @transform_2, window_bounds = array<i64: 1, 40>}, {transform_indices = @transform_3, window_bounds = array<i64: 2, 40>}]} {
    %c0 = arith.constant 0 : index
    %c0_0 = arith.constant 0 : index
    %0 = vector.load %arg1[%c0, %c0_0] : memref<2x32xf32, #tpu.memory_space<vmem>>, vector<2x32xf32>
    %c0_1 = arith.constant 0 : index
    %c0_2 = arith.constant 0 : index
    %1 = vector.load %arg2[%c0_1, %c0_2] : memref<32x40xf32, #tpu.memory_space<vmem>>, vector<32x40xf32>
    %cst = arith.constant dense<0.000000e+00> : vector<2x40xf32>
    %2 = tpu.matmul %0, %1, %cst {dimension_numbers = #tpu.dot_dimension_numbers<[1], [0], [0], [1], [0, 0, 1, 1], [], []>} : vector<2x32xf32>, vector<32x40xf32>, vector<2x40xf32> -> vector<2x40xf32>
    %c0_3 = arith.constant 0 : index
    %c0_4 = arith.constant 0 : index
    %3 = vector.load %arg3[%c0_3, %c0_4] : memref<1x40xf32, #tpu.memory_space<vmem>>, vector<1x40xf32>
    %4 = vector.broadcast %3 : vector<1x40xf32> to vector<2x40xf32>
    %5 = arith.addf %2, %4 : vector<2x40xf32>
    %c0_5 = arith.constant 0 : index
    %c0_6 = arith.constant 0 : index
    %6 = vector.load %arg4[%c0_5, %c0_6] : memref<2x40xf32, #tpu.memory_space<vmem>>, vector<2x40xf32>
    tpu.vector_store %arg4[%c0_5, %c0_6], %5 {strides = array<i32>} : memref<2x40xf32, #tpu.memory_space<vmem>>, vector<2x40xf32>,
    return
  }
  func.func @transform_0(%arg0: i32) -> (i32, i32) {
    %c0_i32 = arith.constant 0 : i32
    %c0_i32_0 = arith.constant 0 : i32
    %c0_i32_1 = arith.constant 0 : i32
    return %c0_i32, %c0_i32_0 : i32, i32
  }
  func.func @transform_1(%arg0: i32) -> (i32, i32) {
    %c0_i32 = arith.constant 0 : i32
    %c0_i32_0 = arith.constant 0 : i32
    return %c0_i32, %arg0 : i32, i32
  }
  func.func @transform_2(%arg0: i32) -> (i32, i32) {
    %c0_i32 = arith.constant 0 : i32
    %c0_i32_0 = arith.constant 0 : i32
    return %c0_i32, %arg0 : i32, i32
  }
  func.func @transform_3(%arg0: i32) -> (i32, i32) {
    %c0_i32 = arith.constant 0 : i32
    %c0_i32_0 = arith.constant 0 : i32
    return %c0_i32, %arg0 : i32, i32
  }
}

module attributes {stable_mosaic.version = 11 : i64} {
  func.func @_stgn_recurrence_kernel(%arg0: i32, %arg1: i32, %arg2: memref<8x2x160xf32, #tpu.memory_space<vmem>>, %arg3: memref<32x96xf32, #tpu.memory_space<vmem>>, %arg4: memref<2x32xf32, #tpu.memory_space<vmem>>, %arg5: memref<2x32xf32, #tpu.memory_space<vmem>>, %arg6: memref<2x32xf32, #tpu.memory_space<vmem>>) attributes {dimension_semantics = [#tpu.dimension_semantics<parallel>, #tpu.dimension_semantics<arbitrary>], iteration_bounds = array<i64: 1, 1>, scalar_prefetch = 0 : i64, scratch_operands = 2 : i64, tpu.core_type = #tpu.core_type<tc>, window_params = [{transform_indices = @transform_0, window_bounds = array<i64: 8, 2, 160>}, {pipeline_mode = #tpu.pipeline_mode<synchronous>, transform_indices = @transform_1, window_bounds = array<i64: 32, 96>}, {transform_indices = @transform_2, window_bounds = array<i64: 2, 32>}]} {
    %c0_i32 = arith.constant 0 : i32
    %0 = arith.cmpi eq, %arg1, %c0_i32 : i32
    %1 = arith.extui %0 : i1 to i32
    %c0_i32_0 = arith.constant 0 : i32
    %2 = arith.cmpi ne, %1, %c0_i32_0 : i32
    scf.if %2 {
      %cst_162 = arith.constant 0.000000e+00 : f32
      %366 = vector.broadcast %cst_162 : f32 to vector<2x32xf32>
      %c0_163 = arith.constant 0 : index
      %c0_164 = arith.constant 0 : index
      %367 = vector.load %arg5[%c0_163, %c0_164] : memref<2x32xf32, #tpu.memory_space<vmem>>, vector<2x32xf32>
      tpu.vector_store %arg5[%c0_163, %c0_164], %366 {strides = array<i32>} : memref<2x32xf32, #tpu.memory_space<vmem>>, vector<2x32xf32>,
      %cst_165 = arith.constant 0.000000e+00 : f32
      %368 = vector.broadcast %cst_165 : f32 to vector<2x32xf32>
      %c0_166 = arith.constant 0 : index
      %c0_167 = arith.constant 0 : index
      %369 = vector.load %arg6[%c0_166, %c0_167] : memref<2x32xf32, #tpu.memory_space<vmem>>, vector<2x32xf32>
      tpu.vector_store %arg6[%c0_166, %c0_167], %368 {strides = array<i32>} : memref<2x32xf32, #tpu.memory_space<vmem>>, vector<2x32xf32>,
    } else {
    }
    %c0_i32_1 = arith.constant 0 : i32
    %3 = arith.index_cast %c0_i32_1 : i32 to index
    %c0 = arith.constant 0 : index
    %c0_2 = arith.constant 0 : index
    %4 = vector.load %arg2[%3, %c0, %c0_2] : memref<8x2x160xf32, #tpu.memory_space<vmem>>, vector<1x2x160xf32>
    %5 = vector.shape_cast %4 : vector<1x2x160xf32> to vector<2x160xf32>
    %c0_3 = arith.constant 0 : index
    %c0_4 = arith.constant 0 : index
    %6 = vector.load %arg5[%c0_3, %c0_4] : memref<2x32xf32, #tpu.memory_space<vmem>>, vector<2x32xf32>
    %c0_5 = arith.constant 0 : index
    %c0_6 = arith.constant 0 : index
    %7 = vector.load %arg6[%c0_5, %c0_6] : memref<2x32xf32, #tpu.memory_space<vmem>>, vector<2x32xf32>
    %c0_7 = arith.constant 0 : index
    %c0_8 = arith.constant 0 : index
    %8 = vector.load %arg3[%c0_7, %c0_8] : memref<32x96xf32, #tpu.memory_space<vmem>>, vector<32x96xf32>
    %cst = arith.constant dense<0.000000e+00> : vector<2x96xf32>
    %9 = tpu.matmul %6, %8, %cst {dimension_numbers = #tpu.dot_dimension_numbers<[1], [0], [0], [1], [0, 0, 1, 1], [], []>} : vector<2x32xf32>, vector<32x96xf32>, vector<2x96xf32> -> vector<2x96xf32>
    %10 = vector.extract_strided_slice %5 {offsets = [0, 0], sizes = [2, 32], strides = [1, 1]} : vector<2x160xf32> to vector<2x32xf32>
    %11 = vector.extract_strided_slice %9 {offsets = [0, 0], sizes = [2, 32], strides = [1, 1]} : vector<2x96xf32> to vector<2x32xf32>
    %12 = arith.addf %10, %11 : vector<2x32xf32>
    %cst_9 = arith.constant 0.000000e+00 : f32
    %13 = vector.broadcast %cst_9 : f32 to vector<2x32xf32>
    %14 = arith.subf %13, %12 : vector<2x32xf32>
    %15 = math.exp %14 : vector<2x32xf32>
    %cst_10 = arith.constant 1.000000e+00 : f32
    %16 = vector.broadcast %cst_10 : f32 to vector<2x32xf32>
    %17 = arith.addf %16, %15 : vector<2x32xf32>
    %cst_11 = arith.constant 1.000000e+00 : f32
    %18 = vector.broadcast %cst_11 : f32 to vector<2x32xf32>
    %19 = arith.divf %18, %17 : vector<2x32xf32>
    %20 = vector.extract_strided_slice %5 {offsets = [0, 32], sizes = [2, 32], strides = [1, 1]} : vector<2x160xf32> to vector<2x32xf32>
    %21 = vector.extract_strided_slice %9 {offsets = [0, 32], sizes = [2, 32], strides = [1, 1]} : vector<2x96xf32> to vector<2x32xf32>
    %22 = arith.addf %20, %21 : vector<2x32xf32>
    %23 = math.tanh %22 : vector<2x32xf32>
    %24 = vector.extract_strided_slice %5 {offsets = [0, 64], sizes = [2, 32], strides = [1, 1]} : vector<2x160xf32> to vector<2x32xf32>
    %25 = vector.extract_strided_slice %9 {offsets = [0, 64], sizes = [2, 32], strides = [1, 1]} : vector<2x96xf32> to vector<2x32xf32>
    %26 = arith.addf %24, %25 : vector<2x32xf32>
    %cst_12 = arith.constant 0.000000e+00 : f32
    %27 = vector.broadcast %cst_12 : f32 to vector<2x32xf32>
    %28 = arith.subf %27, %26 : vector<2x32xf32>
    %29 = math.exp %28 : vector<2x32xf32>
    %cst_13 = arith.constant 1.000000e+00 : f32
    %30 = vector.broadcast %cst_13 : f32 to vector<2x32xf32>
    %31 = arith.addf %30, %29 : vector<2x32xf32>
    %cst_14 = arith.constant 1.000000e+00 : f32
    %32 = vector.broadcast %cst_14 : f32 to vector<2x32xf32>
    %33 = arith.divf %32, %31 : vector<2x32xf32>
    %34 = vector.extract_strided_slice %5 {offsets = [0, 96], sizes = [2, 32], strides = [1, 1]} : vector<2x160xf32> to vector<2x32xf32>
    %35 = arith.mulf %19, %34 : vector<2x32xf32>
    %cst_15 = arith.constant 1.000000e+00 : f32
    %36 = vector.broadcast %cst_15 : f32 to vector<2x32xf32>
    %37 = arith.subf %36, %35 : vector<2x32xf32>
    %38 = arith.mulf %37, %7 : vector<2x32xf32>
    %39 = arith.mulf %35, %23 : vector<2x32xf32>
    %40 = arith.addf %38, %39 : vector<2x32xf32>
    %41 = math.tanh %40 : vector<2x32xf32>
    %42 = arith.mulf %33, %41 : vector<2x32xf32>
    %c0_16 = arith.constant 0 : index
    %c0_17 = arith.constant 0 : index
    %43 = vector.load %arg5[%c0_16, %c0_17] : memref<2x32xf32, #tpu.memory_space<vmem>>, vector<2x32xf32>
    tpu.vector_store %arg5[%c0_16, %c0_17], %42 {strides = array<i32>} : memref<2x32xf32, #tpu.memory_space<vmem>>, vector<2x32xf32>,
    %44 = vector.extract_strided_slice %5 {offsets = [0, 128], sizes = [2, 32], strides = [1, 1]} : vector<2x160xf32> to vector<2x32xf32>
    %45 = arith.mulf %19, %44 : vector<2x32xf32>
    %46 = arith.mulf %45, %23 : vector<2x32xf32>
    %c0_18 = arith.constant 0 : index
    %c0_19 = arith.constant 0 : index
    %47 = vector.load %arg6[%c0_18, %c0_19] : memref<2x32xf32, #tpu.memory_space<vmem>>, vector<2x32xf32>
    tpu.vector_store %arg6[%c0_18, %c0_19], %46 {strides = array<i32>} : memref<2x32xf32, #tpu.memory_space<vmem>>, vector<2x32xf32>,
    %c1_i32 = arith.constant 1 : i32
    %48 = arith.index_cast %c1_i32 : i32 to index
    %c0_20 = arith.constant 0 : index
    %c0_21 = arith.constant 0 : index
    %49 = vector.load %arg2[%48, %c0_20, %c0_21] : memref<8x2x160xf32, #tpu.memory_space<vmem>>, vector<1x2x160xf32>
    %50 = vector.shape_cast %49 : vector<1x2x160xf32> to vector<2x160xf32>
    %c0_22 = arith.constant 0 : index
    %c0_23 = arith.constant 0 : index
    %51 = vector.load %arg5[%c0_22, %c0_23] : memref<2x32xf32, #tpu.memory_space<vmem>>, vector<2x32xf32>
    %c0_24 = arith.constant 0 : index
    %c0_25 = arith.constant 0 : index
    %52 = vector.load %arg6[%c0_24, %c0_25] : memref<2x32xf32, #tpu.memory_space<vmem>>, vector<2x32xf32>
    %c0_26 = arith.constant 0 : index
    %c0_27 = arith.constant 0 : index
    %53 = vector.load %arg3[%c0_26, %c0_27] : memref<32x96xf32, #tpu.memory_space<vmem>>, vector<32x96xf32>
    %cst_28 = arith.constant dense<0.000000e+00> : vector<2x96xf32>
    %54 = tpu.matmul %51, %53, %cst_28 {dimension_numbers = #tpu.dot_dimension_numbers<[1], [0], [0], [1], [0, 0, 1, 1], [], []>} : vector<2x32xf32>, vector<32x96xf32>, vector<2x96xf32> -> vector<2x96xf32>
    %55 = vector.extract_strided_slice %50 {offsets = [0, 0], sizes = [2, 32], strides = [1, 1]} : vector<2x160xf32> to vector<2x32xf32>
    %56 = vector.extract_strided_slice %54 {offsets = [0, 0], sizes = [2, 32], strides = [1, 1]} : vector<2x96xf32> to vector<2x32xf32>
    %57 = arith.addf %55, %56 : vector<2x32xf32>
    %cst_29 = arith.constant 0.000000e+00 : f32
    %58 = vector.broadcast %cst_29 : f32 to vector<2x32xf32>
    %59 = arith.subf %58, %57 : vector<2x32xf32>
    %60 = math.exp %59 : vector<2x32xf32>
    %cst_30 = arith.constant 1.000000e+00 : f32
    %61 = vector.broadcast %cst_30 : f32 to vector<2x32xf32>
    %62 = arith.addf %61, %60 : vector<2x32xf32>
    %cst_31 = arith.constant 1.000000e+00 : f32
    %63 = vector.broadcast %cst_31 : f32 to vector<2x32xf32>
    %64 = arith.divf %63, %62 : vector<2x32xf32>
    %65 = vector.extract_strided_slice %50 {offsets = [0, 32], sizes = [2, 32], strides = [1, 1]} : vector<2x160xf32> to vector<2x32xf32>
    %66 = vector.extract_strided_slice %54 {offsets = [0, 32], sizes = [2, 32], strides = [1, 1]} : vector<2x96xf32> to vector<2x32xf32>
    %67 = arith.addf %65, %66 : vector<2x32xf32>
    %68 = math.tanh %67 : vector<2x32xf32>
    %69 = vector.extract_strided_slice %50 {offsets = [0, 64], sizes = [2, 32], strides = [1, 1]} : vector<2x160xf32> to vector<2x32xf32>
    %70 = vector.extract_strided_slice %54 {offsets = [0, 64], sizes = [2, 32], strides = [1, 1]} : vector<2x96xf32> to vector<2x32xf32>
    %71 = arith.addf %69, %70 : vector<2x32xf32>
    %cst_32 = arith.constant 0.000000e+00 : f32
    %72 = vector.broadcast %cst_32 : f32 to vector<2x32xf32>
    %73 = arith.subf %72, %71 : vector<2x32xf32>
    %74 = math.exp %73 : vector<2x32xf32>
    %cst_33 = arith.constant 1.000000e+00 : f32
    %75 = vector.broadcast %cst_33 : f32 to vector<2x32xf32>
    %76 = arith.addf %75, %74 : vector<2x32xf32>
    %cst_34 = arith.constant 1.000000e+00 : f32
    %77 = vector.broadcast %cst_34 : f32 to vector<2x32xf32>
    %78 = arith.divf %77, %76 : vector<2x32xf32>
    %79 = vector.extract_strided_slice %50 {offsets = [0, 96], sizes = [2, 32], strides = [1, 1]} : vector<2x160xf32> to vector<2x32xf32>
    %80 = arith.mulf %64, %79 : vector<2x32xf32>
    %cst_35 = arith.constant 1.000000e+00 : f32
    %81 = vector.broadcast %cst_35 : f32 to vector<2x32xf32>
    %82 = arith.subf %81, %80 : vector<2x32xf32>
    %83 = arith.mulf %82, %52 : vector<2x32xf32>
    %84 = arith.mulf %80, %68 : vector<2x32xf32>
    %85 = arith.addf %83, %84 : vector<2x32xf32>
    %86 = math.tanh %85 : vector<2x32xf32>
    %87 = arith.mulf %78, %86 : vector<2x32xf32>
    %c0_36 = arith.constant 0 : index
    %c0_37 = arith.constant 0 : index
    %88 = vector.load %arg5[%c0_36, %c0_37] : memref<2x32xf32, #tpu.memory_space<vmem>>, vector<2x32xf32>
    tpu.vector_store %arg5[%c0_36, %c0_37], %87 {strides = array<i32>} : memref<2x32xf32, #tpu.memory_space<vmem>>, vector<2x32xf32>,
    %89 = vector.extract_strided_slice %50 {offsets = [0, 128], sizes = [2, 32], strides = [1, 1]} : vector<2x160xf32> to vector<2x32xf32>
    %90 = arith.mulf %64, %89 : vector<2x32xf32>
    %91 = arith.mulf %90, %68 : vector<2x32xf32>
    %c0_38 = arith.constant 0 : index
    %c0_39 = arith.constant 0 : index
    %92 = vector.load %arg6[%c0_38, %c0_39] : memref<2x32xf32, #tpu.memory_space<vmem>>, vector<2x32xf32>
    tpu.vector_store %arg6[%c0_38, %c0_39], %91 {strides = array<i32>} : memref<2x32xf32, #tpu.memory_space<vmem>>, vector<2x32xf32>,
    %c2_i32 = arith.constant 2 : i32
    %93 = arith.index_cast %c2_i32 : i32 to index
    %c0_40 = arith.constant 0 : index
    %c0_41 = arith.constant 0 : index
    %94 = vector.load %arg2[%93, %c0_40, %c0_41] : memref<8x2x160xf32, #tpu.memory_space<vmem>>, vector<1x2x160xf32>
    %95 = vector.shape_cast %94 : vector<1x2x160xf32> to vector<2x160xf32>
    %c0_42 = arith.constant 0 : index
    %c0_43 = arith.constant 0 : index
    %96 = vector.load %arg5[%c0_42, %c0_43] : memref<2x32xf32, #tpu.memory_space<vmem>>, vector<2x32xf32>
    %c0_44 = arith.constant 0 : index
    %c0_45 = arith.constant 0 : index
    %97 = vector.load %arg6[%c0_44, %c0_45] : memref<2x32xf32, #tpu.memory_space<vmem>>, vector<2x32xf32>
    %c0_46 = arith.constant 0 : index
    %c0_47 = arith.constant 0 : index
    %98 = vector.load %arg3[%c0_46, %c0_47] : memref<32x96xf32, #tpu.memory_space<vmem>>, vector<32x96xf32>
    %cst_48 = arith.constant dense<0.000000e+00> : vector<2x96xf32>
    %99 = tpu.matmul %96, %98, %cst_48 {dimension_numbers = #tpu.dot_dimension_numbers<[1], [0], [0], [1], [0, 0, 1, 1], [], []>} : vector<2x32xf32>, vector<32x96xf32>, vector<2x96xf32> -> vector<2x96xf32>
    %100 = vector.extract_strided_slice %95 {offsets = [0, 0], sizes = [2, 32], strides = [1, 1]} : vector<2x160xf32> to vector<2x32xf32>
    %101 = vector.extract_strided_slice %99 {offsets = [0, 0], sizes = [2, 32], strides = [1, 1]} : vector<2x96xf32> to vector<2x32xf32>
    %102 = arith.addf %100, %101 : vector<2x32xf32>
    %cst_49 = arith.constant 0.000000e+00 : f32
    %103 = vector.broadcast %cst_49 : f32 to vector<2x32xf32>
    %104 = arith.subf %103, %102 : vector<2x32xf32>
    %105 = math.exp %104 : vector<2x32xf32>
    %cst_50 = arith.constant 1.000000e+00 : f32
    %106 = vector.broadcast %cst_50 : f32 to vector<2x32xf32>
    %107 = arith.addf %106, %105 : vector<2x32xf32>
    %cst_51 = arith.constant 1.000000e+00 : f32
    %108 = vector.broadcast %cst_51 : f32 to vector<2x32xf32>
    %109 = arith.divf %108, %107 : vector<2x32xf32>
    %110 = vector.extract_strided_slice %95 {offsets = [0, 32], sizes = [2, 32], strides = [1, 1]} : vector<2x160xf32> to vector<2x32xf32>
    %111 = vector.extract_strided_slice %99 {offsets = [0, 32], sizes = [2, 32], strides = [1, 1]} : vector<2x96xf32> to vector<2x32xf32>
    %112 = arith.addf %110, %111 : vector<2x32xf32>
    %113 = math.tanh %112 : vector<2x32xf32>
    %114 = vector.extract_strided_slice %95 {offsets = [0, 64], sizes = [2, 32], strides = [1, 1]} : vector<2x160xf32> to vector<2x32xf32>
    %115 = vector.extract_strided_slice %99 {offsets = [0, 64], sizes = [2, 32], strides = [1, 1]} : vector<2x96xf32> to vector<2x32xf32>
    %116 = arith.addf %114, %115 : vector<2x32xf32>
    %cst_52 = arith.constant 0.000000e+00 : f32
    %117 = vector.broadcast %cst_52 : f32 to vector<2x32xf32>
    %118 = arith.subf %117, %116 : vector<2x32xf32>
    %119 = math.exp %118 : vector<2x32xf32>
    %cst_53 = arith.constant 1.000000e+00 : f32
    %120 = vector.broadcast %cst_53 : f32 to vector<2x32xf32>
    %121 = arith.addf %120, %119 : vector<2x32xf32>
    %cst_54 = arith.constant 1.000000e+00 : f32
    %122 = vector.broadcast %cst_54 : f32 to vector<2x32xf32>
    %123 = arith.divf %122, %121 : vector<2x32xf32>
    %124 = vector.extract_strided_slice %95 {offsets = [0, 96], sizes = [2, 32], strides = [1, 1]} : vector<2x160xf32> to vector<2x32xf32>
    %125 = arith.mulf %109, %124 : vector<2x32xf32>
    %cst_55 = arith.constant 1.000000e+00 : f32
    %126 = vector.broadcast %cst_55 : f32 to vector<2x32xf32>
    %127 = arith.subf %126, %125 : vector<2x32xf32>
    %128 = arith.mulf %127, %97 : vector<2x32xf32>
    %129 = arith.mulf %125, %113 : vector<2x32xf32>
    %130 = arith.addf %128, %129 : vector<2x32xf32>
    %131 = math.tanh %130 : vector<2x32xf32>
    %132 = arith.mulf %123, %131 : vector<2x32xf32>
    %c0_56 = arith.constant 0 : index
    %c0_57 = arith.constant 0 : index
    %133 = vector.load %arg5[%c0_56, %c0_57] : memref<2x32xf32, #tpu.memory_space<vmem>>, vector<2x32xf32>
    tpu.vector_store %arg5[%c0_56, %c0_57], %132 {strides = array<i32>} : memref<2x32xf32, #tpu.memory_space<vmem>>, vector<2x32xf32>,
    %134 = vector.extract_strided_slice %95 {offsets = [0, 128], sizes = [2, 32], strides = [1, 1]} : vector<2x160xf32> to vector<2x32xf32>
    %135 = arith.mulf %109, %134 : vector<2x32xf32>
    %136 = arith.mulf %135, %113 : vector<2x32xf32>
    %c0_58 = arith.constant 0 : index
    %c0_59 = arith.constant 0 : index
    %137 = vector.load %arg6[%c0_58, %c0_59] : memref<2x32xf32, #tpu.memory_space<vmem>>, vector<2x32xf32>
    tpu.vector_store %arg6[%c0_58, %c0_59], %136 {strides = array<i32>} : memref<2x32xf32, #tpu.memory_space<vmem>>, vector<2x32xf32>,
    %c3_i32 = arith.constant 3 : i32
    %138 = arith.index_cast %c3_i32 : i32 to index
    %c0_60 = arith.constant 0 : index
    %c0_61 = arith.constant 0 : index
    %139 = vector.load %arg2[%138, %c0_60, %c0_61] : memref<8x2x160xf32, #tpu.memory_space<vmem>>, vector<1x2x160xf32>
    %140 = vector.shape_cast %139 : vector<1x2x160xf32> to vector<2x160xf32>
    %c0_62 = arith.constant 0 : index
    %c0_63 = arith.constant 0 : index
    %141 = vector.load %arg5[%c0_62, %c0_63] : memref<2x32xf32, #tpu.memory_space<vmem>>, vector<2x32xf32>
    %c0_64 = arith.constant 0 : index
    %c0_65 = arith.constant 0 : index
    %142 = vector.load %arg6[%c0_64, %c0_65] : memref<2x32xf32, #tpu.memory_space<vmem>>, vector<2x32xf32>
    %c0_66 = arith.constant 0 : index
    %c0_67 = arith.constant 0 : index
    %143 = vector.load %arg3[%c0_66, %c0_67] : memref<32x96xf32, #tpu.memory_space<vmem>>, vector<32x96xf32>
    %cst_68 = arith.constant dense<0.000000e+00> : vector<2x96xf32>
    %144 = tpu.matmul %141, %143, %cst_68 {dimension_numbers = #tpu.dot_dimension_numbers<[1], [0], [0], [1], [0, 0, 1, 1], [], []>} : vector<2x32xf32>, vector<32x96xf32>, vector<2x96xf32> -> vector<2x96xf32>
    %145 = vector.extract_strided_slice %140 {offsets = [0, 0], sizes = [2, 32], strides = [1, 1]} : vector<2x160xf32> to vector<2x32xf32>
    %146 = vector.extract_strided_slice %144 {offsets = [0, 0], sizes = [2, 32], strides = [1, 1]} : vector<2x96xf32> to vector<2x32xf32>
    %147 = arith.addf %145, %146 : vector<2x32xf32>
    %cst_69 = arith.constant 0.000000e+00 : f32
    %148 = vector.broadcast %cst_69 : f32 to vector<2x32xf32>
    %149 = arith.subf %148, %147 : vector<2x32xf32>
    %150 = math.exp %149 : vector<2x32xf32>
    %cst_70 = arith.constant 1.000000e+00 : f32
    %151 = vector.broadcast %cst_70 : f32 to vector<2x32xf32>
    %152 = arith.addf %151, %150 : vector<2x32xf32>
    %cst_71 = arith.constant 1.000000e+00 : f32
    %153 = vector.broadcast %cst_71 : f32 to vector<2x32xf32>
    %154 = arith.divf %153, %152 : vector<2x32xf32>
    %155 = vector.extract_strided_slice %140 {offsets = [0, 32], sizes = [2, 32], strides = [1, 1]} : vector<2x160xf32> to vector<2x32xf32>
    %156 = vector.extract_strided_slice %144 {offsets = [0, 32], sizes = [2, 32], strides = [1, 1]} : vector<2x96xf32> to vector<2x32xf32>
    %157 = arith.addf %155, %156 : vector<2x32xf32>
    %158 = math.tanh %157 : vector<2x32xf32>
    %159 = vector.extract_strided_slice %140 {offsets = [0, 64], sizes = [2, 32], strides = [1, 1]} : vector<2x160xf32> to vector<2x32xf32>
    %160 = vector.extract_strided_slice %144 {offsets = [0, 64], sizes = [2, 32], strides = [1, 1]} : vector<2x96xf32> to vector<2x32xf32>
    %161 = arith.addf %159, %160 : vector<2x32xf32>
    %cst_72 = arith.constant 0.000000e+00 : f32
    %162 = vector.broadcast %cst_72 : f32 to vector<2x32xf32>
    %163 = arith.subf %162, %161 : vector<2x32xf32>
    %164 = math.exp %163 : vector<2x32xf32>
    %cst_73 = arith.constant 1.000000e+00 : f32
    %165 = vector.broadcast %cst_73 : f32 to vector<2x32xf32>
    %166 = arith.addf %165, %164 : vector<2x32xf32>
    %cst_74 = arith.constant 1.000000e+00 : f32
    %167 = vector.broadcast %cst_74 : f32 to vector<2x32xf32>
    %168 = arith.divf %167, %166 : vector<2x32xf32>
    %169 = vector.extract_strided_slice %140 {offsets = [0, 96], sizes = [2, 32], strides = [1, 1]} : vector<2x160xf32> to vector<2x32xf32>
    %170 = arith.mulf %154, %169 : vector<2x32xf32>
    %cst_75 = arith.constant 1.000000e+00 : f32
    %171 = vector.broadcast %cst_75 : f32 to vector<2x32xf32>
    %172 = arith.subf %171, %170 : vector<2x32xf32>
    %173 = arith.mulf %172, %142 : vector<2x32xf32>
    %174 = arith.mulf %170, %158 : vector<2x32xf32>
    %175 = arith.addf %173, %174 : vector<2x32xf32>
    %176 = math.tanh %175 : vector<2x32xf32>
    %177 = arith.mulf %168, %176 : vector<2x32xf32>
    %c0_76 = arith.constant 0 : index
    %c0_77 = arith.constant 0 : index
    %178 = vector.load %arg5[%c0_76, %c0_77] : memref<2x32xf32, #tpu.memory_space<vmem>>, vector<2x32xf32>
    tpu.vector_store %arg5[%c0_76, %c0_77], %177 {strides = array<i32>} : memref<2x32xf32, #tpu.memory_space<vmem>>, vector<2x32xf32>,
    %179 = vector.extract_strided_slice %140 {offsets = [0, 128], sizes = [2, 32], strides = [1, 1]} : vector<2x160xf32> to vector<2x32xf32>
    %180 = arith.mulf %154, %179 : vector<2x32xf32>
    %181 = arith.mulf %180, %158 : vector<2x32xf32>
    %c0_78 = arith.constant 0 : index
    %c0_79 = arith.constant 0 : index
    %182 = vector.load %arg6[%c0_78, %c0_79] : memref<2x32xf32, #tpu.memory_space<vmem>>, vector<2x32xf32>
    tpu.vector_store %arg6[%c0_78, %c0_79], %181 {strides = array<i32>} : memref<2x32xf32, #tpu.memory_space<vmem>>, vector<2x32xf32>,
    %c4_i32 = arith.constant 4 : i32
    %183 = arith.index_cast %c4_i32 : i32 to index
    %c0_80 = arith.constant 0 : index
    %c0_81 = arith.constant 0 : index
    %184 = vector.load %arg2[%183, %c0_80, %c0_81] : memref<8x2x160xf32, #tpu.memory_space<vmem>>, vector<1x2x160xf32>
    %185 = vector.shape_cast %184 : vector<1x2x160xf32> to vector<2x160xf32>
    %c0_82 = arith.constant 0 : index
    %c0_83 = arith.constant 0 : index
    %186 = vector.load %arg5[%c0_82, %c0_83] : memref<2x32xf32, #tpu.memory_space<vmem>>, vector<2x32xf32>
    %c0_84 = arith.constant 0 : index
    %c0_85 = arith.constant 0 : index
    %187 = vector.load %arg6[%c0_84, %c0_85] : memref<2x32xf32, #tpu.memory_space<vmem>>, vector<2x32xf32>
    %c0_86 = arith.constant 0 : index
    %c0_87 = arith.constant 0 : index
    %188 = vector.load %arg3[%c0_86, %c0_87] : memref<32x96xf32, #tpu.memory_space<vmem>>, vector<32x96xf32>
    %cst_88 = arith.constant dense<0.000000e+00> : vector<2x96xf32>
    %189 = tpu.matmul %186, %188, %cst_88 {dimension_numbers = #tpu.dot_dimension_numbers<[1], [0], [0], [1], [0, 0, 1, 1], [], []>} : vector<2x32xf32>, vector<32x96xf32>, vector<2x96xf32> -> vector<2x96xf32>
    %190 = vector.extract_strided_slice %185 {offsets = [0, 0], sizes = [2, 32], strides = [1, 1]} : vector<2x160xf32> to vector<2x32xf32>
    %191 = vector.extract_strided_slice %189 {offsets = [0, 0], sizes = [2, 32], strides = [1, 1]} : vector<2x96xf32> to vector<2x32xf32>
    %192 = arith.addf %190, %191 : vector<2x32xf32>
    %cst_89 = arith.constant 0.000000e+00 : f32
    %193 = vector.broadcast %cst_89 : f32 to vector<2x32xf32>
    %194 = arith.subf %193, %192 : vector<2x32xf32>
    %195 = math.exp %194 : vector<2x32xf32>
    %cst_90 = arith.constant 1.000000e+00 : f32
    %196 = vector.broadcast %cst_90 : f32 to vector<2x32xf32>
    %197 = arith.addf %196, %195 : vector<2x32xf32>
    %cst_91 = arith.constant 1.000000e+00 : f32
    %198 = vector.broadcast %cst_91 : f32 to vector<2x32xf32>
    %199 = arith.divf %198, %197 : vector<2x32xf32>
    %200 = vector.extract_strided_slice %185 {offsets = [0, 32], sizes = [2, 32], strides = [1, 1]} : vector<2x160xf32> to vector<2x32xf32>
    %201 = vector.extract_strided_slice %189 {offsets = [0, 32], sizes = [2, 32], strides = [1, 1]} : vector<2x96xf32> to vector<2x32xf32>
    %202 = arith.addf %200, %201 : vector<2x32xf32>
    %203 = math.tanh %202 : vector<2x32xf32>
    %204 = vector.extract_strided_slice %185 {offsets = [0, 64], sizes = [2, 32], strides = [1, 1]} : vector<2x160xf32> to vector<2x32xf32>
    %205 = vector.extract_strided_slice %189 {offsets = [0, 64], sizes = [2, 32], strides = [1, 1]} : vector<2x96xf32> to vector<2x32xf32>
    %206 = arith.addf %204, %205 : vector<2x32xf32>
    %cst_92 = arith.constant 0.000000e+00 : f32
    %207 = vector.broadcast %cst_92 : f32 to vector<2x32xf32>
    %208 = arith.subf %207, %206 : vector<2x32xf32>
    %209 = math.exp %208 : vector<2x32xf32>
    %cst_93 = arith.constant 1.000000e+00 : f32
    %210 = vector.broadcast %cst_93 : f32 to vector<2x32xf32>
    %211 = arith.addf %210, %209 : vector<2x32xf32>
    %cst_94 = arith.constant 1.000000e+00 : f32
    %212 = vector.broadcast %cst_94 : f32 to vector<2x32xf32>
    %213 = arith.divf %212, %211 : vector<2x32xf32>
    %214 = vector.extract_strided_slice %185 {offsets = [0, 96], sizes = [2, 32], strides = [1, 1]} : vector<2x160xf32> to vector<2x32xf32>
    %215 = arith.mulf %199, %214 : vector<2x32xf32>
    %cst_95 = arith.constant 1.000000e+00 : f32
    %216 = vector.broadcast %cst_95 : f32 to vector<2x32xf32>
    %217 = arith.subf %216, %215 : vector<2x32xf32>
    %218 = arith.mulf %217, %187 : vector<2x32xf32>
    %219 = arith.mulf %215, %203 : vector<2x32xf32>
    %220 = arith.addf %218, %219 : vector<2x32xf32>
    %221 = math.tanh %220 : vector<2x32xf32>
    %222 = arith.mulf %213, %221 : vector<2x32xf32>
    %c0_96 = arith.constant 0 : index
    %c0_97 = arith.constant 0 : index
    %223 = vector.load %arg5[%c0_96, %c0_97] : memref<2x32xf32, #tpu.memory_space<vmem>>, vector<2x32xf32>
    tpu.vector_store %arg5[%c0_96, %c0_97], %222 {strides = array<i32>} : memref<2x32xf32, #tpu.memory_space<vmem>>, vector<2x32xf32>,
    %224 = vector.extract_strided_slice %185 {offsets = [0, 128], sizes = [2, 32], strides = [1, 1]} : vector<2x160xf32> to vector<2x32xf32>
    %225 = arith.mulf %199, %224 : vector<2x32xf32>
    %226 = arith.mulf %225, %203 : vector<2x32xf32>
    %c0_98 = arith.constant 0 : index
    %c0_99 = arith.constant 0 : index
    %227 = vector.load %arg6[%c0_98, %c0_99] : memref<2x32xf32, #tpu.memory_space<vmem>>, vector<2x32xf32>
    tpu.vector_store %arg6[%c0_98, %c0_99], %226 {strides = array<i32>} : memref<2x32xf32, #tpu.memory_space<vmem>>, vector<2x32xf32>,
    %c5_i32 = arith.constant 5 : i32
    %228 = arith.index_cast %c5_i32 : i32 to index
    %c0_100 = arith.constant 0 : index
    %c0_101 = arith.constant 0 : index
    %229 = vector.load %arg2[%228, %c0_100, %c0_101] : memref<8x2x160xf32, #tpu.memory_space<vmem>>, vector<1x2x160xf32>
    %230 = vector.shape_cast %229 : vector<1x2x160xf32> to vector<2x160xf32>
    %c0_102 = arith.constant 0 : index
    %c0_103 = arith.constant 0 : index
    %231 = vector.load %arg5[%c0_102, %c0_103] : memref<2x32xf32, #tpu.memory_space<vmem>>, vector<2x32xf32>
    %c0_104 = arith.constant 0 : index
    %c0_105 = arith.constant 0 : index
    %232 = vector.load %arg6[%c0_104, %c0_105] : memref<2x32xf32, #tpu.memory_space<vmem>>, vector<2x32xf32>
    %c0_106 = arith.constant 0 : index
    %c0_107 = arith.constant 0 : index
    %233 = vector.load %arg3[%c0_106, %c0_107] : memref<32x96xf32, #tpu.memory_space<vmem>>, vector<32x96xf32>
    %cst_108 = arith.constant dense<0.000000e+00> : vector<2x96xf32>
    %234 = tpu.matmul %231, %233, %cst_108 {dimension_numbers = #tpu.dot_dimension_numbers<[1], [0], [0], [1], [0, 0, 1, 1], [], []>} : vector<2x32xf32>, vector<32x96xf32>, vector<2x96xf32> -> vector<2x96xf32>
    %235 = vector.extract_strided_slice %230 {offsets = [0, 0], sizes = [2, 32], strides = [1, 1]} : vector<2x160xf32> to vector<2x32xf32>
    %236 = vector.extract_strided_slice %234 {offsets = [0, 0], sizes = [2, 32], strides = [1, 1]} : vector<2x96xf32> to vector<2x32xf32>
    %237 = arith.addf %235, %236 : vector<2x32xf32>
    %cst_109 = arith.constant 0.000000e+00 : f32
    %238 = vector.broadcast %cst_109 : f32 to vector<2x32xf32>
    %239 = arith.subf %238, %237 : vector<2x32xf32>
    %240 = math.exp %239 : vector<2x32xf32>
    %cst_110 = arith.constant 1.000000e+00 : f32
    %241 = vector.broadcast %cst_110 : f32 to vector<2x32xf32>
    %242 = arith.addf %241, %240 : vector<2x32xf32>
    %cst_111 = arith.constant 1.000000e+00 : f32
    %243 = vector.broadcast %cst_111 : f32 to vector<2x32xf32>
    %244 = arith.divf %243, %242 : vector<2x32xf32>
    %245 = vector.extract_strided_slice %230 {offsets = [0, 32], sizes = [2, 32], strides = [1, 1]} : vector<2x160xf32> to vector<2x32xf32>
    %246 = vector.extract_strided_slice %234 {offsets = [0, 32], sizes = [2, 32], strides = [1, 1]} : vector<2x96xf32> to vector<2x32xf32>
    %247 = arith.addf %245, %246 : vector<2x32xf32>
    %248 = math.tanh %247 : vector<2x32xf32>
    %249 = vector.extract_strided_slice %230 {offsets = [0, 64], sizes = [2, 32], strides = [1, 1]} : vector<2x160xf32> to vector<2x32xf32>
    %250 = vector.extract_strided_slice %234 {offsets = [0, 64], sizes = [2, 32], strides = [1, 1]} : vector<2x96xf32> to vector<2x32xf32>
    %251 = arith.addf %249, %250 : vector<2x32xf32>
    %cst_112 = arith.constant 0.000000e+00 : f32
    %252 = vector.broadcast %cst_112 : f32 to vector<2x32xf32>
    %253 = arith.subf %252, %251 : vector<2x32xf32>
    %254 = math.exp %253 : vector<2x32xf32>
    %cst_113 = arith.constant 1.000000e+00 : f32
    %255 = vector.broadcast %cst_113 : f32 to vector<2x32xf32>
    %256 = arith.addf %255, %254 : vector<2x32xf32>
    %cst_114 = arith.constant 1.000000e+00 : f32
    %257 = vector.broadcast %cst_114 : f32 to vector<2x32xf32>
    %258 = arith.divf %257, %256 : vector<2x32xf32>
    %259 = vector.extract_strided_slice %230 {offsets = [0, 96], sizes = [2, 32], strides = [1, 1]} : vector<2x160xf32> to vector<2x32xf32>
    %260 = arith.mulf %244, %259 : vector<2x32xf32>
    %cst_115 = arith.constant 1.000000e+00 : f32
    %261 = vector.broadcast %cst_115 : f32 to vector<2x32xf32>
    %262 = arith.subf %261, %260 : vector<2x32xf32>
    %263 = arith.mulf %262, %232 : vector<2x32xf32>
    %264 = arith.mulf %260, %248 : vector<2x32xf32>
    %265 = arith.addf %263, %264 : vector<2x32xf32>
    %266 = math.tanh %265 : vector<2x32xf32>
    %267 = arith.mulf %258, %266 : vector<2x32xf32>
    %c0_116 = arith.constant 0 : index
    %c0_117 = arith.constant 0 : index
    %268 = vector.load %arg5[%c0_116, %c0_117] : memref<2x32xf32, #tpu.memory_space<vmem>>, vector<2x32xf32>
    tpu.vector_store %arg5[%c0_116, %c0_117], %267 {strides = array<i32>} : memref<2x32xf32, #tpu.memory_space<vmem>>, vector<2x32xf32>,
    %269 = vector.extract_strided_slice %230 {offsets = [0, 128], sizes = [2, 32], strides = [1, 1]} : vector<2x160xf32> to vector<2x32xf32>
    %270 = arith.mulf %244, %269 : vector<2x32xf32>
    %271 = arith.mulf %270, %248 : vector<2x32xf32>
    %c0_118 = arith.constant 0 : index
    %c0_119 = arith.constant 0 : index
    %272 = vector.load %arg6[%c0_118, %c0_119] : memref<2x32xf32, #tpu.memory_space<vmem>>, vector<2x32xf32>
    tpu.vector_store %arg6[%c0_118, %c0_119], %271 {strides = array<i32>} : memref<2x32xf32, #tpu.memory_space<vmem>>, vector<2x32xf32>,
    %c6_i32 = arith.constant 6 : i32
    %273 = arith.index_cast %c6_i32 : i32 to index
    %c0_120 = arith.constant 0 : index
    %c0_121 = arith.constant 0 : index
    %274 = vector.load %arg2[%273, %c0_120, %c0_121] : memref<8x2x160xf32, #tpu.memory_space<vmem>>, vector<1x2x160xf32>
    %275 = vector.shape_cast %274 : vector<1x2x160xf32> to vector<2x160xf32>
    %c0_122 = arith.constant 0 : index
    %c0_123 = arith.constant 0 : index
    %276 = vector.load %arg5[%c0_122, %c0_123] : memref<2x32xf32, #tpu.memory_space<vmem>>, vector<2x32xf32>
    %c0_124 = arith.constant 0 : index
    %c0_125 = arith.constant 0 : index
    %277 = vector.load %arg6[%c0_124, %c0_125] : memref<2x32xf32, #tpu.memory_space<vmem>>, vector<2x32xf32>
    %c0_126 = arith.constant 0 : index
    %c0_127 = arith.constant 0 : index
    %278 = vector.load %arg3[%c0_126, %c0_127] : memref<32x96xf32, #tpu.memory_space<vmem>>, vector<32x96xf32>
    %cst_128 = arith.constant dense<0.000000e+00> : vector<2x96xf32>
    %279 = tpu.matmul %276, %278, %cst_128 {dimension_numbers = #tpu.dot_dimension_numbers<[1], [0], [0], [1], [0, 0, 1, 1], [], []>} : vector<2x32xf32>, vector<32x96xf32>, vector<2x96xf32> -> vector<2x96xf32>
    %280 = vector.extract_strided_slice %275 {offsets = [0, 0], sizes = [2, 32], strides = [1, 1]} : vector<2x160xf32> to vector<2x32xf32>
    %281 = vector.extract_strided_slice %279 {offsets = [0, 0], sizes = [2, 32], strides = [1, 1]} : vector<2x96xf32> to vector<2x32xf32>
    %282 = arith.addf %280, %281 : vector<2x32xf32>
    %cst_129 = arith.constant 0.000000e+00 : f32
    %283 = vector.broadcast %cst_129 : f32 to vector<2x32xf32>
    %284 = arith.subf %283, %282 : vector<2x32xf32>
    %285 = math.exp %284 : vector<2x32xf32>
    %cst_130 = arith.constant 1.000000e+00 : f32
    %286 = vector.broadcast %cst_130 : f32 to vector<2x32xf32>
    %287 = arith.addf %286, %285 : vector<2x32xf32>
    %cst_131 = arith.constant 1.000000e+00 : f32
    %288 = vector.broadcast %cst_131 : f32 to vector<2x32xf32>
    %289 = arith.divf %288, %287 : vector<2x32xf32>
    %290 = vector.extract_strided_slice %275 {offsets = [0, 32], sizes = [2, 32], strides = [1, 1]} : vector<2x160xf32> to vector<2x32xf32>
    %291 = vector.extract_strided_slice %279 {offsets = [0, 32], sizes = [2, 32], strides = [1, 1]} : vector<2x96xf32> to vector<2x32xf32>
    %292 = arith.addf %290, %291 : vector<2x32xf32>
    %293 = math.tanh %292 : vector<2x32xf32>
    %294 = vector.extract_strided_slice %275 {offsets = [0, 64], sizes = [2, 32], strides = [1, 1]} : vector<2x160xf32> to vector<2x32xf32>
    %295 = vector.extract_strided_slice %279 {offsets = [0, 64], sizes = [2, 32], strides = [1, 1]} : vector<2x96xf32> to vector<2x32xf32>
    %296 = arith.addf %294, %295 : vector<2x32xf32>
    %cst_132 = arith.constant 0.000000e+00 : f32
    %297 = vector.broadcast %cst_132 : f32 to vector<2x32xf32>
    %298 = arith.subf %297, %296 : vector<2x32xf32>
    %299 = math.exp %298 : vector<2x32xf32>
    %cst_133 = arith.constant 1.000000e+00 : f32
    %300 = vector.broadcast %cst_133 : f32 to vector<2x32xf32>
    %301 = arith.addf %300, %299 : vector<2x32xf32>
    %cst_134 = arith.constant 1.000000e+00 : f32
    %302 = vector.broadcast %cst_134 : f32 to vector<2x32xf32>
    %303 = arith.divf %302, %301 : vector<2x32xf32>
    %304 = vector.extract_strided_slice %275 {offsets = [0, 96], sizes = [2, 32], strides = [1, 1]} : vector<2x160xf32> to vector<2x32xf32>
    %305 = arith.mulf %289, %304 : vector<2x32xf32>
    %cst_135 = arith.constant 1.000000e+00 : f32
    %306 = vector.broadcast %cst_135 : f32 to vector<2x32xf32>
    %307 = arith.subf %306, %305 : vector<2x32xf32>
    %308 = arith.mulf %307, %277 : vector<2x32xf32>
    %309 = arith.mulf %305, %293 : vector<2x32xf32>
    %310 = arith.addf %308, %309 : vector<2x32xf32>
    %311 = math.tanh %310 : vector<2x32xf32>
    %312 = arith.mulf %303, %311 : vector<2x32xf32>
    %c0_136 = arith.constant 0 : index
    %c0_137 = arith.constant 0 : index
    %313 = vector.load %arg5[%c0_136, %c0_137] : memref<2x32xf32, #tpu.memory_space<vmem>>, vector<2x32xf32>
    tpu.vector_store %arg5[%c0_136, %c0_137], %312 {strides = array<i32>} : memref<2x32xf32, #tpu.memory_space<vmem>>, vector<2x32xf32>,
    %314 = vector.extract_strided_slice %275 {offsets = [0, 128], sizes = [2, 32], strides = [1, 1]} : vector<2x160xf32> to vector<2x32xf32>
    %315 = arith.mulf %289, %314 : vector<2x32xf32>
    %316 = arith.mulf %315, %293 : vector<2x32xf32>
    %c0_138 = arith.constant 0 : index
    %c0_139 = arith.constant 0 : index
    %317 = vector.load %arg6[%c0_138, %c0_139] : memref<2x32xf32, #tpu.memory_space<vmem>>, vector<2x32xf32>
    tpu.vector_store %arg6[%c0_138, %c0_139], %316 {strides = array<i32>} : memref<2x32xf32, #tpu.memory_space<vmem>>, vector<2x32xf32>,
    %c7_i32 = arith.constant 7 : i32
    %318 = arith.index_cast %c7_i32 : i32 to index
    %c0_140 = arith.constant 0 : index
    %c0_141 = arith.constant 0 : index
    %319 = vector.load %arg2[%318, %c0_140, %c0_141] : memref<8x2x160xf32, #tpu.memory_space<vmem>>, vector<1x2x160xf32>
    %320 = vector.shape_cast %319 : vector<1x2x160xf32> to vector<2x160xf32>
    %c0_142 = arith.constant 0 : index
    %c0_143 = arith.constant 0 : index
    %321 = vector.load %arg5[%c0_142, %c0_143] : memref<2x32xf32, #tpu.memory_space<vmem>>, vector<2x32xf32>
    %c0_144 = arith.constant 0 : index
    %c0_145 = arith.constant 0 : index
    %322 = vector.load %arg6[%c0_144, %c0_145] : memref<2x32xf32, #tpu.memory_space<vmem>>, vector<2x32xf32>
    %c0_146 = arith.constant 0 : index
    %c0_147 = arith.constant 0 : index
    %323 = vector.load %arg3[%c0_146, %c0_147] : memref<32x96xf32, #tpu.memory_space<vmem>>, vector<32x96xf32>
    %cst_148 = arith.constant dense<0.000000e+00> : vector<2x96xf32>
    %324 = tpu.matmul %321, %323, %cst_148 {dimension_numbers = #tpu.dot_dimension_numbers<[1], [0], [0], [1], [0, 0, 1, 1], [], []>} : vector<2x32xf32>, vector<32x96xf32>, vector<2x96xf32> -> vector<2x96xf32>
    %325 = vector.extract_strided_slice %320 {offsets = [0, 0], sizes = [2, 32], strides = [1, 1]} : vector<2x160xf32> to vector<2x32xf32>
    %326 = vector.extract_strided_slice %324 {offsets = [0, 0], sizes = [2, 32], strides = [1, 1]} : vector<2x96xf32> to vector<2x32xf32>
    %327 = arith.addf %325, %326 : vector<2x32xf32>
    %cst_149 = arith.constant 0.000000e+00 : f32
    %328 = vector.broadcast %cst_149 : f32 to vector<2x32xf32>
    %329 = arith.subf %328, %327 : vector<2x32xf32>
    %330 = math.exp %329 : vector<2x32xf32>
    %cst_150 = arith.constant 1.000000e+00 : f32
    %331 = vector.broadcast %cst_150 : f32 to vector<2x32xf32>
    %332 = arith.addf %331, %330 : vector<2x32xf32>
    %cst_151 = arith.constant 1.000000e+00 : f32
    %333 = vector.broadcast %cst_151 : f32 to vector<2x32xf32>
    %334 = arith.divf %333, %332 : vector<2x32xf32>
    %335 = vector.extract_strided_slice %320 {offsets = [0, 32], sizes = [2, 32], strides = [1, 1]} : vector<2x160xf32> to vector<2x32xf32>
    %336 = vector.extract_strided_slice %324 {offsets = [0, 32], sizes = [2, 32], strides = [1, 1]} : vector<2x96xf32> to vector<2x32xf32>
    %337 = arith.addf %335, %336 : vector<2x32xf32>
    %338 = math.tanh %337 : vector<2x32xf32>
    %339 = vector.extract_strided_slice %320 {offsets = [0, 64], sizes = [2, 32], strides = [1, 1]} : vector<2x160xf32> to vector<2x32xf32>
    %340 = vector.extract_strided_slice %324 {offsets = [0, 64], sizes = [2, 32], strides = [1, 1]} : vector<2x96xf32> to vector<2x32xf32>
    %341 = arith.addf %339, %340 : vector<2x32xf32>
    %cst_152 = arith.constant 0.000000e+00 : f32
    %342 = vector.broadcast %cst_152 : f32 to vector<2x32xf32>
    %343 = arith.subf %342, %341 : vector<2x32xf32>
    %344 = math.exp %343 : vector<2x32xf32>
    %cst_153 = arith.constant 1.000000e+00 : f32
    %345 = vector.broadcast %cst_153 : f32 to vector<2x32xf32>
    %346 = arith.addf %345, %344 : vector<2x32xf32>
    %cst_154 = arith.constant 1.000000e+00 : f32
    %347 = vector.broadcast %cst_154 : f32 to vector<2x32xf32>
    %348 = arith.divf %347, %346 : vector<2x32xf32>
    %349 = vector.extract_strided_slice %320 {offsets = [0, 96], sizes = [2, 32], strides = [1, 1]} : vector<2x160xf32> to vector<2x32xf32>
    %350 = arith.mulf %334, %349 : vector<2x32xf32>
    %cst_155 = arith.constant 1.000000e+00 : f32
    %351 = vector.broadcast %cst_155 : f32 to vector<2x32xf32>
    %352 = arith.subf %351, %350 : vector<2x32xf32>
    %353 = arith.mulf %352, %322 : vector<2x32xf32>
    %354 = arith.mulf %350, %338 : vector<2x32xf32>
    %355 = arith.addf %353, %354 : vector<2x32xf32>
    %356 = math.tanh %355 : vector<2x32xf32>
    %357 = arith.mulf %348, %356 : vector<2x32xf32>
    %c0_156 = arith.constant 0 : index
    %c0_157 = arith.constant 0 : index
    %358 = vector.load %arg5[%c0_156, %c0_157] : memref<2x32xf32, #tpu.memory_space<vmem>>, vector<2x32xf32>
    tpu.vector_store %arg5[%c0_156, %c0_157], %357 {strides = array<i32>} : memref<2x32xf32, #tpu.memory_space<vmem>>, vector<2x32xf32>,
    %359 = vector.extract_strided_slice %320 {offsets = [0, 128], sizes = [2, 32], strides = [1, 1]} : vector<2x160xf32> to vector<2x32xf32>
    %360 = arith.mulf %334, %359 : vector<2x32xf32>
    %361 = arith.mulf %360, %338 : vector<2x32xf32>
    %c0_158 = arith.constant 0 : index
    %c0_159 = arith.constant 0 : index
    %362 = vector.load %arg6[%c0_158, %c0_159] : memref<2x32xf32, #tpu.memory_space<vmem>>, vector<2x32xf32>
    tpu.vector_store %arg6[%c0_158, %c0_159], %361 {strides = array<i32>} : memref<2x32xf32, #tpu.memory_space<vmem>>, vector<2x32xf32>,
    %c8_i32 = arith.constant 8 : i32
    %c0_i32_160 = arith.constant 0 : i32
    %363 = arith.cmpi eq, %arg1, %c0_i32_160 : i32
    %364 = arith.extui %363 : i1 to i32
    %c0_i32_161 = arith.constant 0 : i32
    %365 = arith.cmpi ne, %364, %c0_i32_161 : i32
    scf.if %365 {
      %c0_162 = arith.constant 0 : index
      %c0_163 = arith.constant 0 : index
      %366 = vector.load %arg5[%c0_162, %c0_163] : memref<2x32xf32, #tpu.memory_space<vmem>>, vector<2x32xf32>
      %c0_164 = arith.constant 0 : index
      %c0_165 = arith.constant 0 : index
      %367 = vector.load %arg4[%c0_164, %c0_165] : memref<2x32xf32, #tpu.memory_space<vmem>>, vector<2x32xf32>
      tpu.vector_store %arg4[%c0_164, %c0_165], %366 {strides = array<i32>} : memref<2x32xf32, #tpu.memory_space<vmem>>, vector<2x32xf32>,
    } else {
    }
    return
  }
  func.func @transform_0(%arg0: i32, %arg1: i32) -> (i32, i32, i32) {
    %c0_i32 = arith.constant 0 : i32
    %c0_i32_0 = arith.constant 0 : i32
    return %arg1, %arg0, %c0_i32 : i32, i32, i32
  }
  func.func @transform_1(%arg0: i32, %arg1: i32) -> (i32, i32) {
    %c0_i32 = arith.constant 0 : i32
    %c0_i32_0 = arith.constant 0 : i32
    %c0_i32_1 = arith.constant 0 : i32
    return %c0_i32, %c0_i32_0 : i32, i32
  }
  func.func @transform_2(%arg0: i32, %arg1: i32) -> (i32, i32) {
    %c0_i32 = arith.constant 0 : i32
    %c0_i32_0 = arith.constant 0 : i32
    return %arg0, %c0_i32 : i32, i32
  }
}

</mosaic_0001>

<llo_original>
// kernel: stgn_forward.5
$region0: #{stgn_forward.5}
  #allocation0 [shape = 'u32[]', space=smem, size = 0x4, offset = 0x4, fixed_abs, tag = 'smem constant byte address 0x4 - core index']
  #allocation1 [shape = 'u32[72,128]{1,0:T(1,128)}', space=vmem, size = 0x9000, scoped, tag = 'internal scratch']
  %s0 = inlined_call_operand.vmem [shape: f32[2,32], index: 0, kind: input, shape index: {}]
  %s1 = inlined_call_operand.vmem [shape: f32[32,40], index: 1, kind: input, shape index: {}]
  %s2 = inlined_call_operand.vmem [shape: f32[1,40], index: 2, kind: input, shape index: {}]
  %s3 = inlined_call_operand.vmem [shape: f32[2,40], index: 3, kind: output, shape index: {}]
  %s4 = sld [smem:[#allocation0]]
  $region22: #{stgn_forward.5} parent=0
    _
  %s6 = ssub.s32 1, %s4
  %s7 = scalar_select 0, %s6, %s4
  // Predicated region
  $region2: #{stgn_forward.5} parent=0 // pred_check
    _
  $region3: #{stgn_forward.5} parent=0 // pred_check_branch
    %9 = sbr.rel (0) target = $region5
  $region4: #{stgn_forward.5} parent=0 // pred_region
    _
  $region5: #{stgn_forward.5} parent=0 // pred_fallthru
    _
  // Predicated region
  $region6: #{stgn_forward.5} parent=0 // pred_check
    _
  $region7: #{stgn_forward.5} parent=0 // pred_check_branch
    %11 = sbr.rel (0) target = $region9
  $region8: #{stgn_forward.5} parent=0 // pred_region
    _
  $region9: #{stgn_forward.5} parent=0 // pred_fallthru
    _
  // Predicated region
  $region10: #{stgn_forward.5} parent=0 // pred_check
    _
  $region11: #{stgn_forward.5} parent=0 // pred_check_branch
    %13 = sbr.rel (0) target = $region13
  $region12: #{stgn_forward.5} parent=0 // pred_region
    _
  $region13: #{stgn_forward.5} parent=0 // pred_fallthru
    _
  %v14 = vld [vmem:[%s0] sm:$0x3]
  %v15 = vld [vmem:[%s1] sm:$0xff]
  %v16 = vld [vmem:[%s1 + $0x8] sm:$0xff]
  %v17 = vld [vmem:[%s1 + $0x10] sm:$0xff]
  %v18 = vld [vmem:[%s1 + $0x18] sm:$0xff]
  %v19 = vld [vmem:[%s2] sm:$0x1]
  %v21 = vperm.slane %v19, 0
  %vm23 = vcmask 261120
  %v25 = vsel %vm23, %v14, 0
  %27 = vmatpush.msra.mxu0 0.0
  %28 = vmatpush.msra.mxu0 0.0
  %29 = vmatpush.msra.mxu0 0.0
  %30 = vmatpush.msra.mxu0 0.0
  %31 = vmatpush.msra.mxu0 0.0
  %32 = vmatpush.msra.mxu0 0.0
  %33 = vmatpush.msra.mxu0 0.0
  %34 = vmatpush.msra.mxu0 0.0
  %35 = vmatpush.msra.mxu0 0.0
  %36 = vmatpush.msra.mxu0 0.0
  %37 = vmatpush.msra.mxu0 0.0
  %38 = vmatpush.msra.mxu0 0.0
  %39 = vmatpush.msra.mxu0 %v18
  %40 = vmatpush.msra.mxu0 %v17
  %41 = vmatpush.msra.mxu0 %v16
  %42 = vmatpush.msra.mxu0 %v15
  %43 = vmatmul.f32.gmra.mxu0 %v25
  %v44 = vpop.f32.mrf.mxu0
  %v45 = vadd.f32 %v21, %v44
  %46 = vdwg.mxu0
  %vm47 = vcmask 320512
  %48 = vst.msk [vmem:[%s3] sm:$0x3] %vm47, %v45
  // Predicated region
  $region14: #{stgn_forward.5} parent=0 // pred_check
    _
  $region15: #{stgn_forward.5} parent=0 // pred_check_branch
    %50 = sbr.rel (0) target = $region17
  $region16: #{stgn_forward.5} parent=0 // pred_region
    _
  $region17: #{stgn_forward.5} parent=0 // pred_fallthru
    _
  // Predicated region
  $region18: #{stgn_forward.5} parent=0 // pred_check
    _
  $region19: #{stgn_forward.5} parent=0 // pred_check_branch
    %52 = sbr.rel (0) target = $region21
  $region20: #{stgn_forward.5} parent=0 // pred_region
    _
  $region21: #{stgn_forward.5} parent=0 // pred_fallthru
    _

// kernel: stgn_forward.3
$region0: #{stgn_forward.3}
  #allocation0 [shape = 'u32[]', space=smem, size = 0x4, offset = 0x4, fixed_abs, tag = 'smem constant byte address 0x4 - core index']
  #allocation1 [shape = 'u32[72,128]{1,0:T(1,128)}', space=vmem, size = 0x9000, scoped, tag = 'internal scratch']
  %s0 = inlined_call_operand.vmem [shape: f32[16,32], index: 0, kind: input, shape index: {}]
  %s1 = inlined_call_operand.vmem [shape: f32[16,2], index: 1, kind: input, shape index: {}]
  %s2 = inlined_call_operand.vmem [shape: f32[32,224], index: 2, kind: input, shape index: {}]
  %s3 = inlined_call_operand.vmem [shape: f32[8,224], index: 3, kind: input, shape index: {}]
  %s4 = inlined_call_operand.vmem [shape: f32[16,160], index: 4, kind: output, shape index: {}]
  %s5 = sld [smem:[#allocation0]]
  $region26: #{stgn_forward.3} parent=0
    _
  %s7 = ssub.s32 1, %s5
  %s8 = scalar_select 0, %s7, %s5
  // Predicated region
  $region2: #{stgn_forward.3} parent=0 // pred_check
    _
  $region3: #{stgn_forward.3} parent=0 // pred_check_branch
    %10 = sbr.rel (0) target = $region5
  $region4: #{stgn_forward.3} parent=0 // pred_region
    _
  $region5: #{stgn_forward.3} parent=0 // pred_fallthru
    _
  // Predicated region
  $region6: #{stgn_forward.3} parent=0 // pred_check
    _
  $region7: #{stgn_forward.3} parent=0 // pred_check_branch
    %12 = sbr.rel (0) target = $region9
  $region8: #{stgn_forward.3} parent=0 // pred_region
    _
  $region9: #{stgn_forward.3} parent=0 // pred_fallthru
    _
  // Predicated region
  $region10: #{stgn_forward.3} parent=0 // pred_check
    _
  $region11: #{stgn_forward.3} parent=0 // pred_check_branch
    %14 = sbr.rel (0) target = $region13
  $region12: #{stgn_forward.3} parent=0 // pred_region
    _
  $region13: #{stgn_forward.3} parent=0 // pred_fallthru
    _
  // Predicated region
  $region14: #{stgn_forward.3} parent=0 // pred_check
    _
  $region15: #{stgn_forward.3} parent=0 // pred_check_branch
    %16 = sbr.rel (0) target = $region17
  $region16: #{stgn_forward.3} parent=0 // pred_region
    _
  $region17: #{stgn_forward.3} parent=0 // pred_fallthru
    _
  %v17 = vld [vmem:[%s0] sm:$0xff]
  %v18 = vld [vmem:[%s0 + $0x8] sm:$0xff]
  %v19 = vld [vmem:[%s1] sm:$0xff]
  %v20 = vld [vmem:[%s1 + $0x8] sm:$0xff]
  %v21 = vld [vmem:[%s3] ss:$8 sm:$0x3]
  %v22 = vld [vmem:[%s3 + $0x1] ss:$0 sm:$0xff]
  %v23 = vld [vmem:[%s3 + $0x2] ss:$0 sm:$0xff]
  %v24 = vld [vmem:[%s3 + $0x3] ss:$0 sm:$0xff]
  %v25 = vld [vmem:[%s3 + $0x4] ss:$0 sm:$0xff]
  %v26 = vld [vmem:[%s2] sm:$0xff]
  %v27 = vld [vmem:[%s2 + $0x8] sm:$0xff]
  %v28 = vld [vmem:[%s2 + $0x10] sm:$0xff]
  %v29 = vld [vmem:[%s2 + $0x18] sm:$0xff]
  %v30 = vld [vmem:[%s2 + $0x20] sm:$0xff]
  %v31 = vld [vmem:[%s2 + $0x28] sm:$0xff]
  %v32 = vld [vmem:[%s2 + $0x30] sm:$0xff]
  %v33 = vld [vmem:[%s2 + $0x38] sm:$0xff]
  %v35 = vperm.slane %v21, 0
  %v36 = vperm.slane %v21, 1
  %vm39 = vcmask 261120
  %v41 = vsel %vm39, %v17, 0
  %v44 = vsel %vm39, %v18, 0
  %46 = vmatpush.msra.mxu0 0.0
  %47 = vmatpush.msra.mxu0 0.0
  %48 = vmatpush.msra.mxu0 0.0
  %49 = vmatpush.msra.mxu0 0.0
  %50 = vmatpush.msra.mxu0 0.0
  %51 = vmatpush.msra.mxu0 0.0
  %52 = vmatpush.msra.mxu0 0.0
  %53 = vmatpush.msra.mxu0 0.0
  %54 = vmatpush.msra.mxu0 0.0
  %55 = vmatpush.msra.mxu0 0.0
  %56 = vmatpush.msra.mxu0 0.0
  %57 = vmatpush.msra.mxu0 0.0
  %58 = vmatpush.msra.mxu0 %v32
  %59 = vmatpush.msra.mxu0 %v30
  %60 = vmatpush.msra.mxu0 %v28
  %61 = vmatpush.msra.mxu0 %v26
  %62 = vmatmul.f32.gmra.mxu0 %v41
  %v63 = vpop.f32.mrf.mxu0
  %v64 = vadd.f32 %v35, %v63
  %65 = vmatmul.f32.gmra.mxu0 %v44
  %v66 = vpop.f32.mrf.mxu0
  %v67 = vadd.f32 %v35, %v66
  %68 = vdwg.mxu0
  %69 = vmatpush.msra.mxu0 0.0
  %70 = vmatpush.msra.mxu0 0.0
  %71 = vmatpush.msra.mxu0 0.0
  %72 = vmatpush.msra.mxu0 0.0
  %73 = vmatpush.msra.mxu0 0.0
  %74 = vmatpush.msra.mxu0 0.0
  %75 = vmatpush.msra.mxu0 0.0
  %76 = vmatpush.msra.mxu0 0.0
  %77 = vmatpush.msra.mxu0 0.0
  %78 = vmatpush.msra.mxu0 0.0
  %79 = vmatpush.msra.mxu0 0.0
  %80 = vmatpush.msra.mxu0 0.0
  %81 = vmatpush.msra.mxu0 %v33
  %82 = vmatpush.msra.mxu0 %v31
  %83 = vmatpush.msra.mxu0 %v29
  %84 = vmatpush.msra.mxu0 %v27
  %85 = vmatmul.f32.gmra.mxu0 %v41
  %v86 = vpop.f32.mrf.mxu0
  %v87 = vadd.f32 %v36, %v86
  %88 = vmatmul.f32.gmra.mxu0 %v44
  %v89 = vpop.f32.mrf.mxu0
  %v90 = vadd.f32 %v36, %v89
  %91 = vdwg.mxu0
  %93 = vset.pattern.permute.xlu0 0
  %94 = vperm.xlu0 %93, %v19
  %v95 = vpop.permute.xlu0 %94
  %98 = vset.pattern.permute.xlu0 0
  %99 = vperm.xlu0 %98, %v20
  %v100 = vpop.permute.xlu0 %99
  %v102 = vmul.f32 %v95, %v22
  %v103 = vmul.f32 %v100, %v22
  %v104 = vadd.f32 %v102, %v23
  %v105 = vadd.f32 %v103, %v23
  %106 = vset.pattern.permute.xlu0 1
  %107 = vperm.xlu0 %106, %v19
  %v108 = vpop.permute.xlu0 %107
  %110 = vset.pattern.permute.xlu0 1
  %111 = vperm.xlu0 %110, %v20
  %v112 = vpop.permute.xlu0 %111
  %v114 = vmul.f32 %v108, %v24
  %v115 = vmul.f32 %v112, %v24
  %v116 = vadd.f32 %v114, %v25
  %v117 = vadd.f32 %v115, %v25
  %v118 = vadd.f32 %v64, %v104
  %v119 = vadd.f32 %v67, %v105
  %v120 = vadd.f32 %v118, %v116
  %v121 = vadd.f32 %v119, %v117
  %v122 = vsub.f32 0.0, %v104
  %v123 = vsub.f32 0.0, %v105
  %v124 = vmul.f32 %v122, 1.442695
  %v125 = vpow.pop %v124
  %v126 = vmul.f32 %v123, 1.442695
  %v127 = vpow.pop %v126
  %v128 = vadd.f32 %v125, 1.0
  %v129 = vadd.f32 %v127, 1.0
  %v130 = vrcp.pop %v128
  %v131 = vmul.f32 %v128, %v130
  %v132 = vsub.f32 1.0, %v131
  %v133 = vmul.f32 %v130, %v132
  %v134 = vadd.f32 %v130, %v133
  %vm135 = vweird.f32 %v128
  %vm136 = vweird.f32 %v130
  %vm137 = vmor %vm135, %vm136
  %v138 = vsel %vm137, %v130, %v134
  %v139 = vand.u32 2147483647, %v128
  %vm140 = vcmp.eq.f32.partialorder %v139, 8.507059e+37
  %v141 = vand.u32 %v128, 2147483648
  %v142 = vor.u32 1.1754944e-38, %v141
  %v143 = vsel %vm140, %v142, %v138
  %v144 = vmul.f32 1.0, %v143
  %v145 = vrcp.pop %v129
  %v146 = vmul.f32 %v129, %v145
  %v147 = vsub.f32 1.0, %v146
  %v148 = vmul.f32 %v145, %v147
  %v149 = vadd.f32 %v145, %v148
  %vm150 = vweird.f32 %v129
  %vm151 = vweird.f32 %v145
  %vm152 = vmor %vm150, %vm151
  %v153 = vsel %vm152, %v145, %v149
  %v154 = vand.u32 2147483647, %v129
  %vm155 = vcmp.eq.f32.partialorder %v154, 8.507059e+37
  %v156 = vand.u32 %v129, 2147483648
  %v157 = vor.u32 1.1754944e-38, %v156
  %v158 = vsel %vm155, %v157, %v153
  %v159 = vmul.f32 1.0, %v158
  %162 = vrot.lane.b32.xlu0 %v144, 96
  %v163 = vpop.permute.xlu0 %162
  %164 = vrot.lane.b32.xlu0 %v159, 96
  %v165 = vpop.permute.xlu0 %164
  %v168 = vadd.f32 %v64, %v163
  %v169 = vadd.f32 %v67, %v165
  %v170 = vsub.f32 0.0, %v168
  %v171 = vsub.f32 0.0, %v169
  %v172 = vmul.f32 %v170, 1.442695
  %v173 = vpow.pop %v172
  %v174 = vmul.f32 %v171, 1.442695
  %v175 = vpow.pop %v174
  %v176 = vadd.f32 %v173, 1.0
  %v177 = vadd.f32 %v175, 1.0
  %v178 = vrcp.pop %v176
  %v179 = vmul.f32 %v176, %v178
  %v180 = vsub.f32 1.0, %v179
  %v181 = vmul.f32 %v178, %v180
  %v182 = vadd.f32 %v178, %v181
  %vm183 = vweird.f32 %v176
  %vm184 = vweird.f32 %v178
  %vm185 = vmor %vm183, %vm184
  %v186 = vsel %vm185, %v178, %v182
  %v187 = vand.u32 2147483647, %v176
  %vm188 = vcmp.eq.f32.partialorder %v187, 8.507059e+37
  %v189 = vand.u32 %v176, 2147483648
  %v190 = vor.u32 1.1754944e-38, %v189
  %v191 = vsel %vm188, %v190, %v186
  %v192 = vmul.f32 1.0, %v191
  %v193 = vrcp.pop %v177
  %v194 = vmul.f32 %v177, %v193
  %v195 = vsub.f32 1.0, %v194
  %v196 = vmul.f32 %v193, %v195
  %v197 = vadd.f32 %v193, %v196
  %vm198 = vweird.f32 %v177
  %vm199 = vweird.f32 %v193
  %vm200 = vmor %vm198, %vm199
  %v201 = vsel %vm200, %v193, %v197
  %v202 = vand.u32 2147483647, %v177
  %vm203 = vcmp.eq.f32.partialorder %v202, 8.507059e+37
  %v204 = vand.u32 %v177, 2147483648
  %v205 = vor.u32 1.1754944e-38, %v204
  %v206 = vsel %vm203, %v205, %v201
  %v207 = vmul.f32 1.0, %v206
  %v208 = vadd.f32 %v87, %v163
  %v209 = vadd.f32 %v90, %v165
  %v210 = vsub.f32 0.0, %v208
  %v211 = vsub.f32 0.0, %v209
  %v212 = vmul.f32 %v210, 1.442695
  %v213 = vpow.pop %v212
  %v214 = vmul.f32 %v211, 1.442695
  %v215 = vpow.pop %v214
  %v216 = vadd.f32 %v213, 1.0
  %v217 = vadd.f32 %v215, 1.0
  %v218 = vrcp.pop %v216
  %v219 = vmul.f32 %v216, %v218
  %v220 = vsub.f32 1.0, %v219
  %v221 = vmul.f32 %v218, %v220
  %v222 = vadd.f32 %v218, %v221
  %vm223 = vweird.f32 %v216
  %vm224 = vweird.f32 %v218
  %vm225 = vmor %vm223, %vm224
  %v226 = vsel %vm225, %v218, %v222
  %v227 = vand.u32 2147483647, %v216
  %vm228 = vcmp.eq.f32.partialorder %v227, 8.507059e+37
  %v229 = vand.u32 %v216, 2147483648
  %v230 = vor.u32 1.1754944e-38, %v229
  %v231 = vsel %vm228, %v230, %v226
  %v232 = vmul.f32 1.0, %v231
  %v233 = vrcp.pop %v217
  %v234 = vmul.f32 %v217, %v233
  %v235 = vsub.f32 1.0, %v234
  %v236 = vmul.f32 %v233, %v235
  %v237 = vadd.f32 %v233, %v236
  %vm238 = vweird.f32 %v217
  %vm239 = vweird.f32 %v233
  %vm240 = vmor %vm238, %vm239
  %v241 = vsel %vm240, %v233, %v237
  %v242 = vand.u32 2147483647, %v217
  %vm243 = vcmp.eq.f32.partialorder %v242, 8.507059e+37
  %v244 = vand.u32 %v217, 2147483648
  %v245 = vor.u32 1.1754944e-38, %v244
  %v246 = vsel %vm243, %v245, %v241
  %v247 = vmul.f32 1.0, %v246
  %v248 = vsub.f32 0.0, %v116
  %v249 = vsub.f32 0.0, %v117
  %v250 = vmul.f32 %v248, 1.442695
  %v251 = vpow.pop %v250
  %v252 = vmul.f32 %v249, 1.442695
  %v253 = vpow.pop %v252
  %v254 = vadd.f32 %v251, 1.0
  %v255 = vadd.f32 %v253, 1.0
  %v256 = vrcp.pop %v254
  %v257 = vmul.f32 %v254, %v256
  %v258 = vsub.f32 1.0, %v257
  %v259 = vmul.f32 %v256, %v258
  %v260 = vadd.f32 %v256, %v259
  %vm261 = vweird.f32 %v254
  %vm262 = vweird.f32 %v256
  %vm263 = vmor %vm261, %vm262
  %v264 = vsel %vm263, %v256, %v260
  %v265 = vand.u32 2147483647, %v254
  %vm266 = vcmp.eq.f32.partialorder %v265, 8.507059e+37
  %v267 = vand.u32 %v254, 2147483648
  %v268 = vor.u32 1.1754944e-38, %v267
  %v269 = vsel %vm266, %v268, %v264
  %v270 = vmul.f32 1.0, %v269
  %v271 = vrcp.pop %v255
  %v272 = vmul.f32 %v255, %v271
  %v273 = vsub.f32 1.0, %v272
  %v274 = vmul.f32 %v271, %v273
  %v275 = vadd.f32 %v271, %v274
  %vm276 = vweird.f32 %v255
  %vm277 = vweird.f32 %v271
  %vm278 = vmor %vm276, %vm277
  %v279 = vsel %vm278, %v271, %v275
  %v280 = vand.u32 2147483647, %v255
  %vm281 = vcmp.eq.f32.partialorder %v280, 8.507059e+37
  %v282 = vand.u32 %v255, 2147483648
  %v283 = vor.u32 1.1754944e-38, %v282
  %v284 = vsel %vm281, %v283, %v279
  %v285 = vmul.f32 1.0, %v284
  %288 = vrot.lane.b32.xlu0 %v270, 32
  %v289 = vpop.permute.xlu0 %288
  %290 = vrot.lane.b32.xlu0 %v285, 32
  %v291 = vpop.permute.xlu0 %290
  %v294 = vadd.f32 %v87, %v289
  %v295 = vadd.f32 %v90, %v291
  %v296 = vsub.f32 0.0, %v294
  %v297 = vsub.f32 0.0, %v295
  %v298 = vmul.f32 %v296, 1.442695
  %v299 = vpow.pop %v298
  %v300 = vmul.f32 %v297, 1.442695
  %v301 = vpow.pop %v300
  %v302 = vadd.f32 %v299, 1.0
  %v303 = vadd.f32 %v301, 1.0
  %v304 = vrcp.pop %v302
  %v305 = vmul.f32 %v302, %v304
  %v306 = vsub.f32 1.0, %v305
  %v307 = vmul.f32 %v304, %v306
  %v308 = vadd.f32 %v304, %v307
  %vm309 = vweird.f32 %v302
  %vm310 = vweird.f32 %v304
  %vm311 = vmor %vm309, %vm310
  %v312 = vsel %vm311, %v304, %v308
  %v313 = vand.u32 2147483647, %v302
  %vm314 = vcmp.eq.f32.partialorder %v313, 8.507059e+37
  %v315 = vand.u32 %v302, 2147483648
  %v316 = vor.u32 1.1754944e-38, %v315
  %v317 = vsel %vm314, %v316, %v312
  %v318 = vmul.f32 1.0, %v317
  %v319 = vrcp.pop %v303
  %v320 = vmul.f32 %v303, %v319
  %v321 = vsub.f32 1.0, %v320
  %v322 = vmul.f32 %v319, %v321
  %v323 = vadd.f32 %v319, %v322
  %vm324 = vweird.f32 %v303
  %vm325 = vweird.f32 %v319
  %vm326 = vmor %vm324, %vm325
  %v327 = vsel %vm326, %v319, %v323
  %v328 = vand.u32 2147483647, %v303
  %vm329 = vcmp.eq.f32.partialorder %v328, 8.507059e+37
  %v330 = vand.u32 %v303, 2147483648
  %v331 = vor.u32 1.1754944e-38, %v330
  %v332 = vsel %vm329, %v331, %v327
  %v333 = vmul.f32 1.0, %v332
  %336 = vrot.lane.b32.xlu0 %v318, 64
  %v337 = vpop.permute.xlu0 %336
  %338 = vrot.lane.b32.xlu0 %v333, 64
  %v339 = vpop.permute.xlu0 %338
  %v342 = vmul.f32 %v192, %v337
  %v343 = vmul.f32 %v207, %v339
  %v344 = vmul.f32 %v232, %v337
  %v345 = vmul.f32 %v247, %v339
  %vm346 = vcmask 523264
  %v347 = vsel %vm346, %v64, %v120
  %v348 = vsel %vm346, %v67, %v121
  %vm349 = vcmask 785408
  %v350 = vsel %vm349, %v347, %v342
  %v351 = vsel %vm349, %v348, %v343
  %352 = vst [vmem:[%s4] sm:$0xff] %v350
  %353 = vst.msk [vmem:[%s4 + $0x8] sm:$0xff] %vm39, %v344
  %354 = vst [vmem:[%s4 + $0x10] sm:$0xff] %v351
  %355 = vst.msk [vmem:[%s4 + $0x18] sm:$0xff] %vm39, %v345
  // Predicated region
  $region18: #{stgn_forward.3} parent=0 // pred_check
    _
  $region19: #{stgn_forward.3} parent=0 // pred_check_branch
    %357 = sbr.rel (0) target = $region21
  $region20: #{stgn_forward.3} parent=0 // pred_region
    _
  $region21: #{stgn_forward.3} parent=0 // pred_fallthru
    _
  // Predicated region
  $region22: #{stgn_forward.3} parent=0 // pred_check
    _
  $region23: #{stgn_forward.3} parent=0 // pred_check_branch
    %359 = sbr.rel (0) target = $region25
  $region24: #{stgn_forward.3} parent=0 // pred_region
    _
  $region25: #{stgn_forward.3} parent=0 // pred_fallthru
    _

// kernel: stgn_forward.4
$region0: #{stgn_forward.4}
  #allocation0 [shape = 'u32[]', space=smem, size = 0x4, offset = 0x4, fixed_abs, tag = 'smem constant byte address 0x4 - core index']
  #allocation1 [shape = 'u32[72,128]{1,0:T(1,128)}', space=vmem, size = 0x9000, scoped, tag = 'internal scratch']
  #allocation2 [shape = 'f32[2,32]{1,0:T(2,128)}', space=vmem, size = 0x400, scoped, tag = 'scratch operand']
  #allocation3 [shape = 'f32[2,32]{1,0:T(2,128)}', space=vmem, size = 0x400, scoped, tag = 'scratch operand']
  %s0 = inlined_call_operand.vmem [shape: f32[8,2,160], index: 0, kind: input, shape index: {}]
  %s1 = inlined_call_operand.vmem [shape: f32[32,96], index: 1, kind: input, shape index: {}]
  %s2 = inlined_call_operand.vmem [shape: f32[2,32], index: 2, kind: output, shape index: {}]
  %s3 = sld [smem:[#allocation0]]
  $region26: #{stgn_forward.4} parent=0
    _
  %s5 = ssub.s32 1, %s3
  %s6 = scalar_select 0, %s5, %s3
  // Predicated region
  $region2: #{stgn_forward.4} parent=0 // pred_check
    _
  $region3: #{stgn_forward.4} parent=0 // pred_check_branch
    %8 = sbr.rel (0) target = $region5
  $region4: #{stgn_forward.4} parent=0 // pred_region
    _
  $region5: #{stgn_forward.4} parent=0 // pred_fallthru
    _
  // Predicated region
  $region6: #{stgn_forward.4} parent=0 // pred_check
    _
  $region7: #{stgn_forward.4} parent=0 // pred_check_branch
    %10 = sbr.rel (0) target = $region9
  $region8: #{stgn_forward.4} parent=0 // pred_region
    _
  $region9: #{stgn_forward.4} parent=0 // pred_fallthru
    _
  %p11 = scmp.eq.s32.totalorder 0, 0
  // Predicated region
  $region10: #{stgn_forward.4} parent=0 // pred_check
    %p12 = pneg %p11
  $region11: #{stgn_forward.4} parent=0 // pred_check_branch
    %14 = sbr.rel (%p12) target = $region13
  $region12: #{stgn_forward.4} parent=0 // pred_region
    %vm15 = vcmask 254976
    %16 = vst.msk [vmem:[#allocation2] sm:$0x3] %vm15, 0.0
    %17 = vst.msk [vmem:[#allocation3] sm:$0x3] %vm15, 0.0
  $region13: #{stgn_forward.4} parent=0 // pred_fallthru
    _
  %v18 = vld [vmem:[%s0] sm:$0xf]
  %v19 = vld [vmem:[#allocation2] sm:$0x3]
  %v20 = vld [vmem:[#allocation3] sm:$0x3]
  %v21 = vld [vmem:[%s1] sm:$0xff]
  %v22 = vld [vmem:[%s1 + $0x8] sm:$0xff]
  %v23 = vld [vmem:[%s1 + $0x10] sm:$0xff]
  %v24 = vld [vmem:[%s1 + $0x18] sm:$0xff]
  %vm25 = vcmask 261120
  %v27 = vsel %vm25, %v19, 0
  %29 = vmatpush.msra.mxu0 0.0
  %30 = vmatpush.msra.mxu0 0.0
  %31 = vmatpush.msra.mxu0 0.0
  %32 = vmatpush.msra.mxu0 0.0
  %33 = vmatpush.msra.mxu0 0.0
  %34 = vmatpush.msra.mxu0 0.0
  %35 = vmatpush.msra.mxu0 0.0
  %36 = vmatpush.msra.mxu0 0.0
  %37 = vmatpush.msra.mxu0 0.0
  %38 = vmatpush.msra.mxu0 0.0
  %39 = vmatpush.msra.mxu0 0.0
  %40 = vmatpush.msra.mxu0 0.0
  %41 = vmatpush.msra.mxu0 %v24
  %42 = vmatpush.msra.mxu0 %v23
  %43 = vmatpush.msra.mxu0 %v22
  %44 = vmatpush.msra.mxu0 %v21
  %45 = vmatmul.f32.gmra.mxu0 %v27
  %v46 = vpop.f32.mrf.mxu0
  %v47 = vadd.f32 0.0, %v46
  %48 = vdwg.mxu0
  %v49 = vadd.f32 %v18, %v47
  %v50 = vsub.f32 0.0, %v49
  %v51 = vmul.f32 %v50, 1.442695
  %v52 = vpow.pop %v51
  %v53 = vadd.f32 %v52, 1.0
  %v54 = vrcp.pop %v53
  %v55 = vmul.f32 %v53, %v54
  %v56 = vsub.f32 1.0, %v55
  %v57 = vmul.f32 %v54, %v56
  %v58 = vadd.f32 %v54, %v57
  %vm59 = vweird.f32 %v53
  %vm60 = vweird.f32 %v54
  %vm61 = vmor %vm59, %vm60
  %v62 = vsel %vm61, %v54, %v58
  %v63 = vand.u32 2147483647, %v53
  %vm64 = vcmp.eq.f32.partialorder %v63, 8.507059e+37
  %v65 = vand.u32 %v53, 2147483648
  %v66 = vor.u32 1.1754944e-38, %v65
  %v67 = vsel %vm64, %v66, %v62
  %v68 = vmul.f32 1.0, %v67
  %v69 = vtanh.pop %v49
  %71 = vrot.lane.b32.xlu0 %v18, 32
  %v72 = vpop.permute.xlu0 %71
  %v74 = vmul.f32 %v68, %v72
  %v75 = vsub.f32 1.0, %v74
  %v76 = vmul.f32 %v75, %v20
  %78 = vrot.lane.b32.xlu0 %v69, 96
  %v79 = vpop.permute.xlu0 %78
  %v81 = vmul.f32 %v74, %v79
  %v82 = vadd.f32 %v76, %v81
  %v83 = vtanh.pop %v82
  %85 = vrot.lane.b32.xlu0 %v83, 64
  %v86 = vpop.permute.xlu0 %85
  %v88 = vmul.f32 %v68, %v86
  %90 = vst [vmem:[#allocation1] ss:$4 sm:$0xff] %v88
  %v91 = vld.sshfl [vmem:[#allocation1] sm:$0xff pattern:$0x73625140]
  %92 = vrot.lane.b32.xlu0 %v91, 64
  %v93 = vpop.permute.xlu0 %92
  %vm95 = vcmask 254976
  %96 = vst.msk [vmem:[#allocation2] sm:$0x3] %vm95, %v93
  %v97 = vrot.slane %v18, 2
  %v99 = vmul.f32 %v68, %v97
  %v100 = vmul.f32 %v99, %v79
  %101 = vst.msk [vmem:[#allocation3] sm:$0x3] %vm95, %v100
  %s102 = scalar_lea.vmem %s0, 4
  %v103 = vld [vmem:[%s102] sm:$0xf]
  %v104 = vld [vmem:[#allocation2] sm:$0x3]
  %v105 = vld [vmem:[#allocation3] sm:$0x3]
  %v106 = vld [vmem:[%s1] sm:$0xff]
  %v107 = vld [vmem:[%s1 + $0x8] sm:$0xff]
  %v108 = vld [vmem:[%s1 + $0x10] sm:$0xff]
  %v109 = vld [vmem:[%s1 + $0x18] sm:$0xff]
  %v111 = vsel %vm25, %v104, 0
  %113 = vmatpush.msra.mxu0 0.0
  %114 = vmatpush.msra.mxu0 0.0
  %115 = vmatpush.msra.mxu0 0.0
  %116 = vmatpush.msra.mxu0 0.0
  %117 = vmatpush.msra.mxu0 0.0
  %118 = vmatpush.msra.mxu0 0.0
  %119 = vmatpush.msra.mxu0 0.0
  %120 = vmatpush.msra.mxu0 0.0
  %121 = vmatpush.msra.mxu0 0.0
  %122 = vmatpush.msra.mxu0 0.0
  %123 = vmatpush.msra.mxu0 0.0
  %124 = vmatpush.msra.mxu0 0.0
  %125 = vmatpush.msra.mxu0 %v109
  %126 = vmatpush.msra.mxu0 %v108
  %127 = vmatpush.msra.mxu0 %v107
  %128 = vmatpush.msra.mxu0 %v106
  %129 = vmatmul.f32.gmra.mxu0 %v111
  %v130 = vpop.f32.mrf.mxu0
  %v131 = vadd.f32 0.0, %v130
  %132 = vdwg.mxu0
  %v133 = vadd.f32 %v103, %v131
  %v134 = vsub.f32 0.0, %v133
  %v135 = vmul.f32 %v134, 1.442695
  %v136 = vpow.pop %v135
  %v137 = vadd.f32 %v136, 1.0
  %v138 = vrcp.pop %v137
  %v139 = vmul.f32 %v137, %v138
  %v140 = vsub.f32 1.0, %v139
  %v141 = vmul.f32 %v138, %v140
  %v142 = vadd.f32 %v138, %v141
  %vm143 = vweird.f32 %v137
  %vm144 = vweird.f32 %v138
  %vm145 = vmor %vm143, %vm144
  %v146 = vsel %vm145, %v138, %v142
  %v147 = vand.u32 2147483647, %v137
  %vm148 = vcmp.eq.f32.partialorder %v147, 8.507059e+37
  %v149 = vand.u32 %v137, 2147483648
  %v150 = vor.u32 1.1754944e-38, %v149
  %v151 = vsel %vm148, %v150, %v146
  %v152 = vmul.f32 1.0, %v151
  %v153 = vtanh.pop %v133
  %155 = vrot.lane.b32.xlu0 %v103, 32
  %v156 = vpop.permute.xlu0 %155
  %v158 = vmul.f32 %v152, %v156
  %v159 = vsub.f32 1.0, %v158
  %v160 = vmul.f32 %v159, %v105
  %162 = vrot.lane.b32.xlu0 %v153, 96
  %v163 = vpop.permute.xlu0 %162
  %v165 = vmul.f32 %v158, %v163
  %v166 = vadd.f32 %v160, %v165
  %v167 = vtanh.pop %v166
  %169 = vrot.lane.b32.xlu0 %v167, 64
  %v170 = vpop.permute.xlu0 %169
  %v172 = vmul.f32 %v152, %v170
  %174 = vst [vmem:[#allocation1] ss:$4 sm:$0xff] %v172
  %v175 = vld.sshfl [vmem:[#allocation1] sm:$0xff pattern:$0x73625140]
  %176 = vrot.lane.b32.xlu0 %v175, 64
  %v177 = vpop.permute.xlu0 %176
  %179 = vst.msk [vmem:[#allocation2] sm:$0x3] %vm95, %v177
  %v180 = vrot.slane %v103, 2
  %v182 = vmul.f32 %v152, %v180
  %v183 = vmul.f32 %v182, %v163
  %184 = vst.msk [vmem:[#allocation3] sm:$0x3] %vm95, %v183
  %s185 = scalar_lea.vmem %s0, 8
  %v186 = vld [vmem:[%s185] sm:$0xf]
  %v187 = vld [vmem:[#allocation2] sm:$0x3]
  %v188 = vld [vmem:[#allocation3] sm:$0x3]
  %v189 = vld [vmem:[%s1] sm:$0xff]
  %v190 = vld [vmem:[%s1 + $0x8] sm:$0xff]
  %v191 = vld [vmem:[%s1 + $0x10] sm:$0xff]
  %v192 = vld [vmem:[%s1 + $0x18] sm:$0xff]
  %v194 = vsel %vm25, %v187, 0
  %196 = vmatpush.msra.mxu0 0.0
  %197 = vmatpush.msra.mxu0 0.0
  %198 = vmatpush.msra.mxu0 0.0
  %199 = vmatpush.msra.mxu0 0.0
  %200 = vmatpush.msra.mxu0 0.0
  %201 = vmatpush.msra.mxu0 0.0
  %202 = vmatpush.msra.mxu0 0.0
  %203 = vmatpush.msra.mxu0 0.0
  %204 = vmatpush.msra.mxu0 0.0
  %205 = vmatpush.msra.mxu0 0.0
  %206 = vmatpush.msra.mxu0 0.0
  %207 = vmatpush.msra.mxu0 0.0
  %208 = vmatpush.msra.mxu0 %v192
  %209 = vmatpush.msra.mxu0 %v191
  %210 = vmatpush.msra.mxu0 %v190
  %211 = vmatpush.msra.mxu0 %v189
  %212 = vmatmul.f32.gmra.mxu0 %v194
  %v213 = vpop.f32.mrf.mxu0
  %v214 = vadd.f32 0.0, %v213
  %215 = vdwg.mxu0
  %v216 = vadd.f32 %v186, %v214
  %v217 = vsub.f32 0.0, %v216
  %v218 = vmul.f32 %v217, 1.442695
  %v219 = vpow.pop %v218
  %v220 = vadd.f32 %v219, 1.0
  %v221 = vrcp.pop %v220
  %v222 = vmul.f32 %v220, %v221
  %v223 = vsub.f32 1.0, %v222
  %v224 = vmul.f32 %v221, %v223
  %v225 = vadd.f32 %v221, %v224
  %vm226 = vweird.f32 %v220
  %vm227 = vweird.f32 %v221
  %vm228 = vmor %vm226, %vm227
  %v229 = vsel %vm228, %v221, %v225
  %v230 = vand.u32 2147483647, %v220
  %vm231 = vcmp.eq.f32.partialorder %v230, 8.507059e+37
  %v232 = vand.u32 %v220, 2147483648
  %v233 = vor.u32 1.1754944e-38, %v232
  %v234 = vsel %vm231, %v233, %v229
  %v235 = vmul.f32 1.0, %v234
  %v236 = vtanh.pop %v216
  %238 = vrot.lane.b32.xlu0 %v186, 32
  %v239 = vpop.permute.xlu0 %238
  %v241 = vmul.f32 %v235, %v239
  %v242 = vsub.f32 1.0, %v241
  %v243 = vmul.f32 %v242, %v188
  %245 = vrot.lane.b32.xlu0 %v236, 96
  %v246 = vpop.permute.xlu0 %245
  %v248 = vmul.f32 %v241, %v246
  %v249 = vadd.f32 %v243, %v248
  %v250 = vtanh.pop %v249
  %252 = vrot.lane.b32.xlu0 %v250, 64
  %v253 = vpop.permute.xlu0 %252
  %v255 = vmul.f32 %v235, %v253
  %257 = vst [vmem:[#allocation1] ss:$4 sm:$0xff] %v255
  %v258 = vld.sshfl [vmem:[#allocation1] sm:$0xff pattern:$0x73625140]
  %259 = vrot.lane.b32.xlu0 %v258, 64
  %v260 = vpop.permute.xlu0 %259
  %262 = vst.msk [vmem:[#allocation2] sm:$0x3] %vm95, %v260
  %v263 = vrot.slane %v186, 2
  %v265 = vmul.f32 %v235, %v263
  %v266 = vmul.f32 %v265, %v246
  %267 = vst.msk [vmem:[#allocation3] sm:$0x3] %vm95, %v266
  %s268 = scalar_lea.vmem %s0, 12
  %v269 = vld [vmem:[%s268] sm:$0xf]
  %v270 = vld [vmem:[#allocation2] sm:$0x3]
  %v271 = vld [vmem:[#allocation3] sm:$0x3]
  %v272 = vld [vmem:[%s1] sm:$0xff]
  %v273 = vld [vmem:[%s1 + $0x8] sm:$0xff]
  %v274 = vld [vmem:[%s1 + $0x10] sm:$0xff]
  %v275 = vld [vmem:[%s1 + $0x18] sm:$0xff]
  %v277 = vsel %vm25, %v270, 0
  %279 = vmatpush.msra.mxu0 0.0
  %280 = vmatpush.msra.mxu0 0.0
  %281 = vmatpush.msra.mxu0 0.0
  %282 = vmatpush.msra.mxu0 0.0
  %283 = vmatpush.msra.mxu0 0.0
  %284 = vmatpush.msra.mxu0 0.0
  %285 = vmatpush.msra.mxu0 0.0
  %286 = vmatpush.msra.mxu0 0.0
  %287 = vmatpush.msra.mxu0 0.0
  %288 = vmatpush.msra.mxu0 0.0
  %289 = vmatpush.msra.mxu0 0.0
  %290 = vmatpush.msra.mxu0 0.0
  %291 = vmatpush.msra.mxu0 %v275
  %292 = vmatpush.msra.mxu0 %v274
  %293 = vmatpush.msra.mxu0 %v273
  %294 = vmatpush.msra.mxu0 %v272
  %295 = vmatmul.f32.gmra.mxu0 %v277
  %v296 = vpop.f32.mrf.mxu0
  %v297 = vadd.f32 0.0, %v296
  %298 = vdwg.mxu0
  %v299 = vadd.f32 %v269, %v297
  %v300 = vsub.f32 0.0, %v299
  %v301 = vmul.f32 %v300, 1.442695
  %v302 = vpow.pop %v301
  %v303 = vadd.f32 %v302, 1.0
  %v304 = vrcp.pop %v303
  %v305 = vmul.f32 %v303, %v304
  %v306 = vsub.f32 1.0, %v305
  %v307 = vmul.f32 %v304, %v306
  %v308 = vadd.f32 %v304, %v307
  %vm309 = vweird.f32 %v303
  %vm310 = vweird.f32 %v304
  %vm311 = vmor %vm309, %vm310
  %v312 = vsel %vm311, %v304, %v308
  %v313 = vand.u32 2147483647, %v303
  %vm314 = vcmp.eq.f32.partialorder %v313, 8.507059e+37
  %v315 = vand.u32 %v303, 2147483648
  %v316 = vor.u32 1.1754944e-38, %v315
  %v317 = vsel %vm314, %v316, %v312
  %v318 = vmul.f32 1.0, %v317
  %v319 = vtanh.pop %v299
  %321 = vrot.lane.b32.xlu0 %v269, 32
  %v322 = vpop.permute.xlu0 %321
  %v324 = vmul.f32 %v318, %v322
  %v325 = vsub.f32 1.0, %v324
  %v326 = vmul.f32 %v325, %v271
  %328 = vrot.lane.b32.xlu0 %v319, 96
  %v329 = vpop.permute.xlu0 %328
  %v331 = vmul.f32 %v324, %v329
  %v332 = vadd.f32 %v326, %v331
  %v333 = vtanh.pop %v332
  %335 = vrot.lane.b32.xlu0 %v333, 64
  %v336 = vpop.permute.xlu0 %335
  %v338 = vmul.f32 %v318, %v336
  %340 = vst [vmem:[#allocation1] ss:$4 sm:$0xff] %v338
  %v341 = vld.sshfl [vmem:[#allocation1] sm:$0xff pattern:$0x73625140]
  %342 = vrot.lane.b32.xlu0 %v341, 64
  %v343 = vpop.permute.xlu0 %342
  %345 = vst.msk [vmem:[#allocation2] sm:$0x3] %vm95, %v343
  %v346 = vrot.slane %v269, 2
  %v348 = vmul.f32 %v318, %v346
  %v349 = vmul.f32 %v348, %v329
  %350 = vst.msk [vmem:[#allocation3] sm:$0x3] %vm95, %v349
  %s351 = scalar_lea.vmem %s0, 16
  %v352 = vld [vmem:[%s351] sm:$0xf]
  %v353 = vld [vmem:[#allocation2] sm:$0x3]
  %v354 = vld [vmem:[#allocation3] sm:$0x3]
  %v355 = vld [vmem:[%s1] sm:$0xff]
  %v356 = vld [vmem:[%s1 + $0x8] sm:$0xff]
  %v357 = vld [vmem:[%s1 + $0x10] sm:$0xff]
  %v358 = vld [vmem:[%s1 + $0x18] sm:$0xff]
  %v360 = vsel %vm25, %v353, 0
  %362 = vmatpush.msra.mxu0 0.0
  %363 = vmatpush.msra.mxu0 0.0
  %364 = vmatpush.msra.mxu0 0.0
  %365 = vmatpush.msra.mxu0 0.0
  %366 = vmatpush.msra.mxu0 0.0
  %367 = vmatpush.msra.mxu0 0.0
  %368 = vmatpush.msra.mxu0 0.0
  %369 = vmatpush.msra.mxu0 0.0
  %370 = vmatpush.msra.mxu0 0.0
  %371 = vmatpush.msra.mxu0 0.0
  %372 = vmatpush.msra.mxu0 0.0
  %373 = vmatpush.msra.mxu0 0.0
  %374 = vmatpush.msra.mxu0 %v358
  %375 = vmatpush.msra.mxu0 %v357
  %376 = vmatpush.msra.mxu0 %v356
  %377 = vmatpush.msra.mxu0 %v355
  %378 = vmatmul.f32.gmra.mxu0 %v360
  %v379 = vpop.f32.mrf.mxu0
  %v380 = vadd.f32 0.0, %v379
  %381 = vdwg.mxu0
  %v382 = vadd.f32 %v352, %v380
  %v383 = vsub.f32 0.0, %v382
  %v384 = vmul.f32 %v383, 1.442695
  %v385 = vpow.pop %v384
  %v386 = vadd.f32 %v385, 1.0
  %v387 = vrcp.pop %v386
  %v388 = vmul.f32 %v386, %v387
  %v389 = vsub.f32 1.0, %v388
  %v390 = vmul.f32 %v387, %v389
  %v391 = vadd.f32 %v387, %v390
  %vm392 = vweird.f32 %v386
  %vm393 = vweird.f32 %v387
  %vm394 = vmor %vm392, %vm393
  %v395 = vsel %vm394, %v387, %v391
  %v396 = vand.u32 2147483647, %v386
  %vm397 = vcmp.eq.f32.partialorder %v396, 8.507059e+37
  %v398 = vand.u32 %v386, 2147483648
  %v399 = vor.u32 1.1754944e-38, %v398
  %v400 = vsel %vm397, %v399, %v395
  %v401 = vmul.f32 1.0, %v400
  %v402 = vtanh.pop %v382
  %404 = vrot.lane.b32.xlu0 %v352, 32
  %v405 = vpop.permute.xlu0 %404
  %v407 = vmul.f32 %v401, %v405
  %v408 = vsub.f32 1.0, %v407
  %v409 = vmul.f32 %v408, %v354
  %411 = vrot.lane.b32.xlu0 %v402, 96
  %v412 = vpop.permute.xlu0 %411
  %v414 = vmul.f32 %v407, %v412
  %v415 = vadd.f32 %v409, %v414
  %v416 = vtanh.pop %v415
  %418 = vrot.lane.b32.xlu0 %v416, 64
  %v419 = vpop.permute.xlu0 %418
  %v421 = vmul.f32 %v401, %v419
  %423 = vst [vmem:[#allocation1] ss:$4 sm:$0xff] %v421
  %v424 = vld.sshfl [vmem:[#allocation1] sm:$0xff pattern:$0x73625140]
  %425 = vrot.lane.b32.xlu0 %v424, 64
  %v426 = vpop.permute.xlu0 %425
  %428 = vst.msk [vmem:[#allocation2] sm:$0x3] %vm95, %v426
  %v429 = vrot.slane %v352, 2
  %v431 = vmul.f32 %v401, %v429
  %v432 = vmul.f32 %v431, %v412
  %433 = vst.msk [vmem:[#allocation3] sm:$0x3] %vm95, %v432
  %s434 = scalar_lea.vmem %s0, 20
  %v435 = vld [vmem:[%s434] sm:$0xf]
  %v436 = vld [vmem:[#allocation2] sm:$0x3]
  %v437 = vld [vmem:[#allocation3] sm:$0x3]
  %v438 = vld [vmem:[%s1] sm:$0xff]
  %v439 = vld [vmem:[%s1 + $0x8] sm:$0xff]
  %v440 = vld [vmem:[%s1 + $0x10] sm:$0xff]
  %v441 = vld [vmem:[%s1 + $0x18] sm:$0xff]
  %v443 = vsel %vm25, %v436, 0
  %445 = vmatpush.msra.mxu0 0.0
  %446 = vmatpush.msra.mxu0 0.0
  %447 = vmatpush.msra.mxu0 0.0
  %448 = vmatpush.msra.mxu0 0.0
  %449 = vmatpush.msra.mxu0 0.0
  %450 = vmatpush.msra.mxu0 0.0
  %451 = vmatpush.msra.mxu0 0.0
  %452 = vmatpush.msra.mxu0 0.0
  %453 = vmatpush.msra.mxu0 0.0
  %454 = vmatpush.msra.mxu0 0.0
  %455 = vmatpush.msra.mxu0 0.0
  %456 = vmatpush.msra.mxu0 0.0
  %457 = vmatpush.msra.mxu0 %v441
  %458 = vmatpush.msra.mxu0 %v440
  %459 = vmatpush.msra.mxu0 %v439
  %460 = vmatpush.msra.mxu0 %v438
  %461 = vmatmul.f32.gmra.mxu0 %v443
  %v462 = vpop.f32.mrf.mxu0
  %v463 = vadd.f32 0.0, %v462
  %464 = vdwg.mxu0
  %v465 = vadd.f32 %v435, %v463
  %v466 = vsub.f32 0.0, %v465
  %v467 = vmul.f32 %v466, 1.442695
  %v468 = vpow.pop %v467
  %v469 = vadd.f32 %v468, 1.0
  %v470 = vrcp.pop %v469
  %v471 = vmul.f32 %v469, %v470
  %v472 = vsub.f32 1.0, %v471
  %v473 = vmul.f32 %v470, %v472
  %v474 = vadd.f32 %v470, %v473
  %vm475 = vweird.f32 %v469
  %vm476 = vweird.f32 %v470
  %vm477 = vmor %vm475, %vm476
  %v478 = vsel %vm477, %v470, %v474
  %v479 = vand.u32 2147483647, %v469
  %vm480 = vcmp.eq.f32.partialorder %v479, 8.507059e+37
  %v481 = vand.u32 %v469, 2147483648
  %v482 = vor.u32 1.1754944e-38, %v481
  %v483 = vsel %vm480, %v482, %v478
  %v484 = vmul.f32 1.0, %v483
  %v485 = vtanh.pop %v465
  %487 = vrot.lane.b32.xlu0 %v435, 32
  %v488 = vpop.permute.xlu0 %487
  %v490 = vmul.f32 %v484, %v488
  %v491 = vsub.f32 1.0, %v490
  %v492 = vmul.f32 %v491, %v437
  %494 = vrot.lane.b32.xlu0 %v485, 96
  %v495 = vpop.permute.xlu0 %494
  %v497 = vmul.f32 %v490, %v495
  %v498 = vadd.f32 %v492, %v497
  %v499 = vtanh.pop %v498
  %501 = vrot.lane.b32.xlu0 %v499, 64
  %v502 = vpop.permute.xlu0 %501
  %v504 = vmul.f32 %v484, %v502
  %506 = vst [vmem:[#allocation1] ss:$4 sm:$0xff] %v504
  %v507 = vld.sshfl [vmem:[#allocation1] sm:$0xff pattern:$0x73625140]
  %508 = vrot.lane.b32.xlu0 %v507, 64
  %v509 = vpop.permute.xlu0 %508
  %511 = vst.msk [vmem:[#allocation2] sm:$0x3] %vm95, %v509
  %v512 = vrot.slane %v435, 2
  %v514 = vmul.f32 %v484, %v512
  %v515 = vmul.f32 %v514, %v495
  %516 = vst.msk [vmem:[#allocation3] sm:$0x3] %vm95, %v515
  %s517 = scalar_lea.vmem %s0, 24
  %v518 = vld [vmem:[%s517] sm:$0xf]
  %v519 = vld [vmem:[#allocation2] sm:$0x3]
  %v520 = vld [vmem:[#allocation3] sm:$0x3]
  %v521 = vld [vmem:[%s1] sm:$0xff]
  %v522 = vld [vmem:[%s1 + $0x8] sm:$0xff]
  %v523 = vld [vmem:[%s1 + $0x10] sm:$0xff]
  %v524 = vld [vmem:[%s1 + $0x18] sm:$0xff]
  %v526 = vsel %vm25, %v519, 0
  %528 = vmatpush.msra.mxu0 0.0
  %529 = vmatpush.msra.mxu0 0.0
  %530 = vmatpush.msra.mxu0 0.0
  %531 = vmatpush.msra.mxu0 0.0
  %532 = vmatpush.msra.mxu0 0.0
  %533 = vmatpush.msra.mxu0 0.0
  %534 = vmatpush.msra.mxu0 0.0
  %535 = vmatpush.msra.mxu0 0.0
  %536 = vmatpush.msra.mxu0 0.0
  %537 = vmatpush.msra.mxu0 0.0
  %538 = vmatpush.msra.mxu0 0.0
  %539 = vmatpush.msra.mxu0 0.0
  %540 = vmatpush.msra.mxu0 %v524
  %541 = vmatpush.msra.mxu0 %v523
  %542 = vmatpush.msra.mxu0 %v522
  %543 = vmatpush.msra.mxu0 %v521
  %544 = vmatmul.f32.gmra.mxu0 %v526
  %v545 = vpop.f32.mrf.mxu0
  %v546 = vadd.f32 0.0, %v545
  %547 = vdwg.mxu0
  %v548 = vadd.f32 %v518, %v546
  %v549 = vsub.f32 0.0, %v548
  %v550 = vmul.f32 %v549, 1.442695
  %v551 = vpow.pop %v550
  %v552 = vadd.f32 %v551, 1.0
  %v553 = vrcp.pop %v552
  %v554 = vmul.f32 %v552, %v553
  %v555 = vsub.f32 1.0, %v554
  %v556 = vmul.f32 %v553, %v555
  %v557 = vadd.f32 %v553, %v556
  %vm558 = vweird.f32 %v552
  %vm559 = vweird.f32 %v553
  %vm560 = vmor %vm558, %vm559
  %v561 = vsel %vm560, %v553, %v557
  %v562 = vand.u32 2147483647, %v552
  %vm563 = vcmp.eq.f32.partialorder %v562, 8.507059e+37
  %v564 = vand.u32 %v552, 2147483648
  %v565 = vor.u32 1.1754944e-38, %v564
  %v566 = vsel %vm563, %v565, %v561
  %v567 = vmul.f32 1.0, %v566
  %v568 = vtanh.pop %v548
  %570 = vrot.lane.b32.xlu0 %v518, 32
  %v571 = vpop.permute.xlu0 %570
  %v573 = vmul.f32 %v567, %v571
  %v574 = vsub.f32 1.0, %v573
  %v575 = vmul.f32 %v574, %v520
  %577 = vrot.lane.b32.xlu0 %v568, 96
  %v578 = vpop.permute.xlu0 %577
  %v580 = vmul.f32 %v573, %v578
  %v581 = vadd.f32 %v575, %v580
  %v582 = vtanh.pop %v581
  %584 = vrot.lane.b32.xlu0 %v582, 64
  %v585 = vpop.permute.xlu0 %584
  %v587 = vmul.f32 %v567, %v585
  %589 = vst [vmem:[#allocation1] ss:$4 sm:$0xff] %v587
  %v590 = vld.sshfl [vmem:[#allocation1] sm:$0xff pattern:$0x73625140]
  %591 = vrot.lane.b32.xlu0 %v590, 64
  %v592 = vpop.permute.xlu0 %591
  %594 = vst.msk [vmem:[#allocation2] sm:$0x3] %vm95, %v592
  %v595 = vrot.slane %v518, 2
  %v597 = vmul.f32 %v567, %v595
  %v598 = vmul.f32 %v597, %v578
  %599 = vst.msk [vmem:[#allocation3] sm:$0x3] %vm95, %v598
  %s600 = scalar_lea.vmem %s0, 28
  %v601 = vld [vmem:[%s600] sm:$0xf]
  %v602 = vld [vmem:[#allocation2] sm:$0x3]
  %v603 = vld [vmem:[#allocation3] sm:$0x3]
  %v604 = vld [vmem:[%s1] sm:$0xff]
  %v605 = vld [vmem:[%s1 + $0x8] sm:$0xff]
  %v606 = vld [vmem:[%s1 + $0x10] sm:$0xff]
  %v607 = vld [vmem:[%s1 + $0x18] sm:$0xff]
  %v609 = vsel %vm25, %v602, 0
  %611 = vmatpush.msra.mxu0 0.0
  %612 = vmatpush.msra.mxu0 0.0
  %613 = vmatpush.msra.mxu0 0.0
  %614 = vmatpush.msra.mxu0 0.0
  %615 = vmatpush.msra.mxu0 0.0
  %616 = vmatpush.msra.mxu0 0.0
  %617 = vmatpush.msra.mxu0 0.0
  %618 = vmatpush.msra.mxu0 0.0
  %619 = vmatpush.msra.mxu0 0.0
  %620 = vmatpush.msra.mxu0 0.0
  %621 = vmatpush.msra.mxu0 0.0
  %622 = vmatpush.msra.mxu0 0.0
  %623 = vmatpush.msra.mxu0 %v607
  %624 = vmatpush.msra.mxu0 %v606
  %625 = vmatpush.msra.mxu0 %v605
  %626 = vmatpush.msra.mxu0 %v604
  %627 = vmatmul.f32.gmra.mxu0 %v609
  %v628 = vpop.f32.mrf.mxu0
  %v629 = vadd.f32 0.0, %v628
  %630 = vdwg.mxu0
  %v631 = vadd.f32 %v601, %v629
  %v632 = vsub.f32 0.0, %v631
  %v633 = vmul.f32 %v632, 1.442695
  %v634 = vpow.pop %v633
  %v635 = vadd.f32 %v634, 1.0
  %v636 = vrcp.pop %v635
  %v637 = vmul.f32 %v635, %v636
  %v638 = vsub.f32 1.0, %v637
  %v639 = vmul.f32 %v636, %v638
  %v640 = vadd.f32 %v636, %v639
  %vm641 = vweird.f32 %v635
  %vm642 = vweird.f32 %v636
  %vm643 = vmor %vm641, %vm642
  %v644 = vsel %vm643, %v636, %v640
  %v645 = vand.u32 2147483647, %v635
  %vm646 = vcmp.eq.f32.partialorder %v645, 8.507059e+37
  %v647 = vand.u32 %v635, 2147483648
  %v648 = vor.u32 1.1754944e-38, %v647
  %v649 = vsel %vm646, %v648, %v644
  %v650 = vmul.f32 1.0, %v649
  %v651 = vtanh.pop %v631
  %653 = vrot.lane.b32.xlu0 %v601, 32
  %v654 = vpop.permute.xlu0 %653
  %v656 = vmul.f32 %v650, %v654
  %v657 = vsub.f32 1.0, %v656
  %v658 = vmul.f32 %v657, %v603
  %660 = vrot.lane.b32.xlu0 %v651, 96
  %v661 = vpop.permute.xlu0 %660
  %v663 = vmul.f32 %v656, %v661
  %v664 = vadd.f32 %v658, %v663
  %v665 = vtanh.pop %v664
  %667 = vrot.lane.b32.xlu0 %v665, 64
  %v668 = vpop.permute.xlu0 %667
  %v670 = vmul.f32 %v650, %v668
  %672 = vst [vmem:[#allocation1] ss:$4 sm:$0xff] %v670
  %v673 = vld.sshfl [vmem:[#allocation1] sm:$0xff pattern:$0x73625140]
  %674 = vrot.lane.b32.xlu0 %v673, 64
  %v675 = vpop.permute.xlu0 %674
  %677 = vst.msk [vmem:[#allocation2] sm:$0x3] %vm95, %v675
  %v678 = vrot.slane %v601, 2
  %v680 = vmul.f32 %v650, %v678
  %v681 = vmul.f32 %v680, %v661
  %682 = vst.msk [vmem:[#allocation3] sm:$0x3] %vm95, %v681
  // Predicated region
  $region14: #{stgn_forward.4} parent=0 // pred_check
    %p683 = pneg %p11
  $region15: #{stgn_forward.4} parent=0 // pred_check_branch
    %685 = sbr.rel (%p683) target = $region17
  $region16: #{stgn_forward.4} parent=0 // pred_region
    %v686 = vld [vmem:[#allocation2] sm:$0x3]
    %687 = vst.msk [vmem:[%s2] sm:$0x3] %vm95, %v686
  $region17: #{stgn_forward.4} parent=0 // pred_fallthru
    _
  // Predicated region
  $region18: #{stgn_forward.4} parent=0 // pred_check
    _
  $region19: #{stgn_forward.4} parent=0 // pred_check_branch
    %689 = sbr.rel (0) target = $region21
  $region20: #{stgn_forward.4} parent=0 // pred_region
    _
  $region21: #{stgn_forward.4} parent=0 // pred_fallthru
    _
  // Predicated region
  $region22: #{stgn_forward.4} parent=0 // pred_check
    _
  $region23: #{stgn_forward.4} parent=0 // pred_check_branch
    %691 = sbr.rel (0) target = $region25
  $region24: #{stgn_forward.4} parent=0 // pred_region
    _
  $region25: #{stgn_forward.4} parent=0 // pred_fallthru
    _

</llo_original>
